<compile_context>
chip_gen: v5e
topology: v5e:2x2
jax: 0.10.0
libtpu: 0.0.40
codegen_flags: <defaults>
</compile_context>

<pallas_src>
import functools

import jax
import jax.numpy as jnp
from jax.experimental import pallas as pl
from jax.experimental.pallas import tpu as pltpu

_SQRT_HALF = 0.7071067811865476
_SQRT_2_OVER_PI = 0.7978845608028654


def _gelu_tanh(x):
    # tanh approximation of GELU (EUP-friendly; |err| vs exact erf-GELU < ~1e-3).
    return 0.5 * x * (1.0 + jnp.tanh(_SQRT_2_OVER_PI * (x + 0.044715 * (x * x * x))))


def _gelu_exact(x):
    # exact GELU (erf), matches torch.nn.GELU(approximate='none'); used in the reference.
    return 0.5 * x * (1.0 + jax.lax.erf(x * _SQRT_HALF))


# --------------------------------------------------------------------------
# Fused FFNBlock2 kernel: conv1(1x1) -> dwconv(3x3, pad 1) -> GELU -> conv2(1x1)
# --------------------------------------------------------------------------
def _ffn_block2_kernel(x_ref, xt_ref, xb_ref,            # inputs (NHWC tiles)
                       w1_ref, b1_ref,                   # conv1 : (Cin,Ch), (1,Ch)
                       wdw_ref, bdw_ref,                 # dwconv: (3,3,Ch), (1,Ch)
                       w2_ref, b2_ref,                   # conv2 : (Ch,Cout), (1,Cout)
                       o_ref,                            # output tile (1,TH,Wp,Cout)
                       hid_ref,                          # VMEM scratch (TH+2, Wp, Ch)
                       *, TH, Wp, W_true, Ch, Cout, pad_rows):
    t = pl.program_id(1)
    nt = pl.num_programs(1)
    Cin = x_ref.shape[-1]
    f32 = jnp.float32

    w1 = w1_ref[...]
    b1 = b1_ref[...]                                     # (1, Ch)

    # ---- conv1 (1x1) on the TH main rows: single MXU matmul, M = TH*Wp ----
    # (default matmul precision; ~1e-3 deviation vs f32-HIGHEST, within tolerance)
    h_main = jnp.dot(x_ref[0].reshape(TH * Wp, Cin), w1,
                     preferred_element_type=f32) + b1
    h_main = h_main.reshape(TH, Wp, Ch)
    hid_ref[pl.ds(1, TH), :, :] = h_main

    # ---- top halo row of the hidden tensor (zero at the image top border) ----
    @pl.when(t == 0)
    def _():
        hid_ref[0, :, :] = jnp.zeros((Wp, Ch), f32)

    @pl.when(t > 0)
    def _():
        hid_ref[0, :, :] = (jnp.dot(xt_ref[0, 0], w1, preferred_element_type=f32)
                            + b1)

    # ---- bottom halo row (+ ragged tail rows) — zero at/below the image bottom ----
    @pl.when(t < nt - 1)
    def _():
        hid_ref[TH + 1, :, :] = (jnp.dot(xb_ref[0, 0], w1, preferred_element_type=f32)
                                 + b1)

    @pl.when(t == nt - 1)
    def _():
        hid_ref[pl.ds(TH + 1 - pad_rows, pad_rows + 1), :, :] = \
            jnp.zeros((pad_rows + 1, Wp, Ch), f32)

    # ---- depthwise 3x3: vertical taps from scratch (aligned slab slices),
    #      horizontal taps via pltpu.roll (XLU) + one border column mask ----
    wdw = wdw_ref[...]                                   # (3, 3, Ch)
    accC = h_main * wdw[1, 1, :]
    accR = h_main * wdw[1, 0, :]                         # becomes the left-neighbour tap
    accL = h_main * wdw[1, 2, :]                         # becomes the right-neighbour tap
    for ky in (0, 2):
        rows = hid_ref[pl.ds(ky, TH), :, :]              # (TH, Wp, Ch)
        accC = accC + rows * wdw[ky, 1, :]
        accR = accR + rows * wdw[ky, 0, :]
        accL = accL + rows * wdw[ky, 2, :]

    n = TH * Wp

    def roll_w(v, shift):                                # roll along W via flattened sublanes
        return pltpu.roll(v.reshape(n, Ch), shift, axis=0).reshape(TH, Wp, Ch)

    left = roll_w(accR, 1)                               # value at col j <- accR[col j-1]
    right = roll_w(accL, n - 1)                          # value at col j <- accL[col j+1]
    col = jax.lax.broadcasted_iota(jnp.int32, (TH, Wp, Ch), 1)
    pre = (accC
           + jnp.where(col >= 1, left, 0.0)              # zero-pad at the left border
           + jnp.where(col <= W_true - 2, right, 0.0))   # zero-pad at the right border

    act = _gelu_tanh(pre + bdw_ref[...])

    # ---- conv2 (1x1): single MXU matmul, M = TH*Wp ----
    out = jnp.dot(act.reshape(n, Ch), w2_ref[...],
                  preferred_element_type=f32) + b2_ref[...]
    o_ref[...] = out.reshape(1, TH, Wp, Cout).astype(o_ref.dtype)


def _choose_row_tile(H, Wp, Cin, Ch, Cout, budget_bytes=10 * 1024 * 1024):
    """Largest row tile whose per-step VMEM footprint stays under the budget."""
    def lanes(c):
        return ((c + 127) // 128) * 128

    def step_bytes(th):
        x_blk = th * Wp * lanes(Cin) * 4                 # input tile (double-buffered)
        o_blk = th * Wp * lanes(Cout) * 4                # output tile (double-buffered)
        hid = (th + 2) * Wp * lanes(Ch) * 4              # hidden scratch
        live = 5 * th * Wp * lanes(Ch) * 4               # live f32 temporaries (rough)
        return 2 * (x_blk + o_blk) + hid + live

    th = min(H, 1024)
    while th > 1 and step_bytes(th) > budget_bytes:
        th -= 1
    return th


@functools.partial(jax.jit, static_argnames=("row_tile",))
def ffn_block2_forward(x_nchw, params, *, row_tile=None):
    """FFNBlock2 forward. x_nchw: (B, Cin, H, W) like PyTorch; returns (B, Cout, H, W)."""
    x = jnp.transpose(x_nchw, (0, 2, 3, 1)).astype(jnp.float32)   # NCHW -> NHWC
    B, H, W, Cin = x.shape
    Ch = params["w1"].shape[1]
    Cout = params["w2"].shape[1]

    Wp = ((W + 7) // 8) * 8                              # sublane-aligned width
    TH = row_tile if row_tile is not None else _choose_row_tile(H, Wp, Cin, Ch, Cout)
    TH = max(1, min(int(TH), H))
    nt = (H + TH - 1) // TH
    H_pad = nt * TH
    pad_rows = H_pad - H                                 # ragged rows in the last tile

    if H_pad != H or Wp != W:
        x = jnp.pad(x, ((0, 0), (0, H_pad - H), (0, Wp - W), (0, 0)))

    kernel = functools.partial(_ffn_block2_kernel, TH=TH, Wp=Wp, W_true=W,
                               Ch=Ch, Cout=Cout, pad_rows=pad_rows)

    out = pl.pallas_call(
        kernel,
        out_shape=jax.ShapeDtypeStruct((B, H_pad, Wp, Cout), jnp.float32),
        grid=(B, nt),
        in_specs=[
            # main TH-row tile of x
            pl.BlockSpec((1, TH, Wp, Cin), lambda b, t: (b, t, 0, 0)),
            # 1-row halo above / below (block size 1 along H => row index),
            # clamped into the padded image; the kernel zeroes it at the border.
            pl.BlockSpec((1, 1, Wp, Cin),
                         lambda b, t: (b, jnp.maximum(t * TH - 1, 0), 0, 0)),
            pl.BlockSpec((1, 1, Wp, Cin),
                         lambda b, t: (b, jnp.minimum((t + 1) * TH, H_pad - 1), 0, 0)),
            # weights / biases: constant index_map -> resident in VMEM
            pl.BlockSpec((Cin, Ch), lambda b, t: (0, 0)),
            pl.BlockSpec((1, Ch), lambda b, t: (0, 0)),
            pl.BlockSpec((3, 3, Ch), lambda b, t: (0, 0, 0)),
            pl.BlockSpec((1, Ch), lambda b, t: (0, 0)),
            pl.BlockSpec((Ch, Cout), lambda b, t: (0, 0)),
            pl.BlockSpec((1, Cout), lambda b, t: (0, 0)),
        ],
        out_specs=pl.BlockSpec((1, TH, Wp, Cout), lambda b, t: (b, t, 0, 0)),
        scratch_shapes=[pltpu.VMEM((TH + 2, Wp, Ch), jnp.float32)],
        compiler_params=pltpu.CompilerParams(
            dimension_semantics=("parallel", "parallel"),
            vmem_limit_bytes=32 * 1024 * 1024),
    )(x, x, x,
      params["w1"], params["b1"].reshape(1, Ch),
      params["wdw"], params["bdw"].reshape(1, Ch),
      params["w2"], params["b2"].reshape(1, Cout))

    out = out[:, :H, :W, :]
    return jnp.transpose(out, (0, 3, 1, 2))              # NHWC -> NCHW


# --------------------------------------------------------------------------
# Pure-JAX reference (exact GELU, HIGHEST matmul precision) for verification
# --------------------------------------------------------------------------
def ffn_block2_reference(x_nchw, p):
    x = jnp.transpose(x_nchw, (0, 2, 3, 1)).astype(jnp.float32)
    hi = jax.lax.Precision.HIGHEST
    h = jnp.einsum("bhwc,cd->bhwd", x, p["w1"], precision=hi) + p["b1"]
    B, H, W, Ch = h.shape
    hp = jnp.pad(h, ((0, 0), (1, 1), (1, 1), (0, 0)))
    acc = jnp.zeros_like(h)
    for dy in range(3):
        for dx in range(3):
            acc = acc + hp[:, dy:dy + H, dx:dx + W, :] * p["wdw"][dy, dx]
    act = _gelu_exact(acc + p["bdw"])
    y = jnp.einsum("bhwc,cd->bhwd", act, p["w2"], precision=hi) + p["b2"]
    return jnp.transpose(y, (0, 3, 1, 2))


# --------------------------------------------------------------------------
# Synthetic parameters.  PyTorch layout mapping:
#   conv1.weight (Ch, Cin, 1, 1)  -> w1  = weight[:, :, 0, 0].T            (Cin, Ch)
#   dconv.weight (Ch, 1, 3, 3)    -> wdw = weight[:, 0].transpose(1, 2, 0) (3, 3, Ch)
#   conv2.weight (Cout, Ch, 1, 1) -> w2  = weight[:, :, 0, 0].T            (Ch, Cout)
# --------------------------------------------------------------------------
def init_params(key, in_channels, hidden_channels, out_channels):
    ks = jax.random.split(key, 6)
    return dict(
        w1=jax.random.normal(ks[0], (in_channels, hidden_channels), jnp.float32) * 0.08,
        b1=jax.random.normal(ks[1], (hidden_channels,), jnp.float32) * 0.02,
        wdw=jax.random.normal(ks[2], (3, 3, hidden_channels), jnp.float32) * 0.15,
        bdw=jax.random.normal(ks[3], (hidden_channels,), jnp.float32) * 0.02,
        w2=jax.random.normal(ks[4], (hidden_channels, out_channels), jnp.float32) * 0.08,
        b2=jax.random.normal(ks[5], (out_channels,), jnp.float32) * 0.02,
    )


if __name__ == "__main__":
    B, Cin, H, W = 2, 32, 16, 16
    Ch, Cout = 64, 32            # FFNBlock2(in=32, hidden=64, out=32)

    key = jax.random.PRNGKey(0)
    kx, kp = jax.random.split(key)
    x = jax.random.normal(kx, (B, Cin, H, W), jnp.float32)     # NCHW like PyTorch
    params = init_params(kp, Cin, Ch, Cout)

    out = jax.block_until_ready(ffn_block2_forward(x, params))
    ref = jax.block_until_ready(ffn_block2_reference(x, params))

    assert out.shape == (B, Cout, H, W), out.shape
    assert bool(jnp.all(jnp.isfinite(out)))
    max_err = float(jnp.max(jnp.abs(out - ref)))
    assert max_err < 1e-2, f"mismatch vs reference: {max_err}"

    # Second check: ragged H / unaligned W exercise the padding + masking path.
    x2 = jax.random.normal(jax.random.PRNGKey(1), (1, Cin, 13, 10), jnp.float32)
    out2 = jax.block_until_ready(ffn_block2_forward(x2, params, row_tile=8))
    ref2 = ffn_block2_reference(x2, params)
    max_err2 = float(jnp.max(jnp.abs(out2 - ref2)))
    assert out2.shape == (1, Cout, 13, 10), out2.shape
    assert max_err2 < 1e-2, f"ragged-path mismatch vs reference: {max_err2}"

    print("KERNEL_OK")
</pallas_src>

<mosaic_0001>
module attributes {stable_mosaic.version = 11 : i64} {
  func.func @_ffn_block2_kernel(%arg0: i32, %arg1: i32, %arg2: memref<1x16x16x32xf32, #tpu.memory_space<vmem>>, %arg3: memref<1x1x16x32xf32, #tpu.memory_space<vmem>>, %arg4: memref<1x1x16x32xf32, #tpu.memory_space<vmem>>, %arg5: memref<32x64xf32, #tpu.memory_space<vmem>>, %arg6: memref<1x64xf32, #tpu.memory_space<vmem>>, %arg7: memref<3x3x64xf32, #tpu.memory_space<vmem>>, %arg8: memref<1x64xf32, #tpu.memory_space<vmem>>, %arg9: memref<64x32xf32, #tpu.memory_space<vmem>>, %arg10: memref<1x32xf32, #tpu.memory_space<vmem>>, %arg11: memref<1x16x16x32xf32, #tpu.memory_space<vmem>>, %arg12: memref<18x16x64xf32, #tpu.memory_space<vmem>>) attributes {dimension_semantics = [#tpu.dimension_semantics<parallel>, #tpu.dimension_semantics<parallel>], iteration_bounds = array<i64: 2, 1>, scalar_prefetch = 0 : i64, scratch_operands = 1 : i64, tpu.core_type = #tpu.core_type<tc>, window_params = [{transform_indices = @transform_0, window_bounds = array<i64: 1, 16, 16, 32>}, {transform_indices = @transform_1, window_bounds = array<i64: 1, 1, 16, 32>}, {transform_indices = @transform_2, window_bounds = array<i64: 1, 1, 16, 32>}, {pipeline_mode = #tpu.pipeline_mode<synchronous>, transform_indices = @transform_3, window_bounds = array<i64: 32, 64>}, {pipeline_mode = #tpu.pipeline_mode<synchronous>, transform_indices = @transform_4, window_bounds = array<i64: 1, 64>}, {pipeline_mode = #tpu.pipeline_mode<synchronous>, transform_indices = @transform_5, window_bounds = array<i64: 3, 3, 64>}, {pipeline_mode = #tpu.pipeline_mode<synchronous>, transform_indices = @transform_6, window_bounds = array<i64: 1, 64>}, {pipeline_mode = #tpu.pipeline_mode<synchronous>, transform_indices = @transform_7, window_bounds = array<i64: 64, 32>}, {pipeline_mode = #tpu.pipeline_mode<synchronous>, transform_indices = @transform_8, window_bounds = array<i64: 1, 32>}, {transform_indices = @transform_9, window_bounds = array<i64: 1, 16, 16, 32>}]} {
    %c0 = arith.constant 0 : index
    %c0_0 = arith.constant 0 : index
    %0 = vector.load %arg5[%c0, %c0_0] : memref<32x64xf32, #tpu.memory_space<vmem>>, vector<32x64xf32>
    %c0_1 = arith.constant 0 : index
    %c0_2 = arith.constant 0 : index
    %1 = vector.load %arg6[%c0_1, %c0_2] : memref<1x64xf32, #tpu.memory_space<vmem>>, vector<1x64xf32>
    %c0_3 = arith.constant 0 : index
    %c0_4 = arith.constant 0 : index
    %c0_5 = arith.constant 0 : index
    %c0_6 = arith.constant 0 : index
    %2 = vector.load %arg2[%c0_3, %c0_4, %c0_5, %c0_6] : memref<1x16x16x32xf32, #tpu.memory_space<vmem>>, vector<1x16x16x32xf32>
    %3 = vector.shape_cast %2 : vector<1x16x16x32xf32> to vector<16x16x32xf32>
    %4 = vector.shape_cast %3 : vector<16x16x32xf32> to vector<256x32xf32>
    %cst = arith.constant dense<0.000000e+00> : vector<256x64xf32>
    %5 = tpu.matmul %4, %0, %cst {dimension_numbers = #tpu.dot_dimension_numbers<[1], [0], [0], [1], [0, 0, 1, 1], [], []>} : vector<256x32xf32>, vector<32x64xf32>, vector<256x64xf32> -> vector<256x64xf32>
    %6 = vector.broadcast %1 : vector<1x64xf32> to vector<256x64xf32>
    %7 = arith.addf %5, %6 : vector<256x64xf32>
    %8 = vector.shape_cast %7 : vector<256x64xf32> to vector<16x16x64xf32>
    %c1 = arith.constant 1 : index
    %c0_7 = arith.constant 0 : index
    %c0_8 = arith.constant 0 : index
    %9 = vector.load %arg12[%c1, %c0_7, %c0_8] : memref<18x16x64xf32, #tpu.memory_space<vmem>>, vector<16x16x64xf32>
    tpu.vector_store %arg12[%c1, %c0_7, %c0_8], %8 {strides = array<i32>} : memref<18x16x64xf32, #tpu.memory_space<vmem>>, vector<16x16x64xf32>,
    %c0_i32 = arith.constant 0 : i32
    %10 = arith.cmpi eq, %arg1, %c0_i32 : i32
    %11 = arith.extui %10 : i1 to i32
    %c0_i32_9 = arith.constant 0 : i32
    %12 = arith.cmpi ne, %11, %c0_i32_9 : i32
    scf.if %12 {
      %cst_42 = arith.constant 0.000000e+00 : f32
      %118 = vector.broadcast %cst_42 : f32 to vector<16x64xf32>
      %c0_43 = arith.constant 0 : index
      %c0_44 = arith.constant 0 : index
      %c0_45 = arith.constant 0 : index
      %119 = vector.load %arg12[%c0_43, %c0_44, %c0_45] : memref<18x16x64xf32, #tpu.memory_space<vmem>>, vector<1x16x64xf32>
      %120 = vector.shape_cast %119 : vector<1x16x64xf32> to vector<16x64xf32>
      %121 = vector.shape_cast %118 : vector<16x64xf32> to vector<1x16x64xf32>
      tpu.vector_store %arg12[%c0_43, %c0_44, %c0_45], %121 {strides = array<i32>} : memref<18x16x64xf32, #tpu.memory_space<vmem>>, vector<1x16x64xf32>,
    } else {
    }
    %c0_i32_10 = arith.constant 0 : i32
    %13 = arith.cmpi sgt, %arg1, %c0_i32_10 : i32
    %14 = arith.extui %13 : i1 to i32
    %c0_i32_11 = arith.constant 0 : i32
    %15 = arith.cmpi ne, %14, %c0_i32_11 : i32
    scf.if %15 {
      %c0_42 = arith.constant 0 : index
      %c0_43 = arith.constant 0 : index
      %c0_44 = arith.constant 0 : index
      %c0_45 = arith.constant 0 : index
      %118 = vector.load %arg3[%c0_42, %c0_43, %c0_44, %c0_45] : memref<1x1x16x32xf32, #tpu.memory_space<vmem>>, vector<1x1x16x32xf32>
      %119 = vector.shape_cast %118 : vector<1x1x16x32xf32> to vector<16x32xf32>
      %cst_46 = arith.constant dense<0.000000e+00> : vector<16x64xf32>
      %120 = tpu.matmul %119, %0, %cst_46 {dimension_numbers = #tpu.dot_dimension_numbers<[1], [0], [0], [1], [0, 0, 1, 1], [], []>} : vector<16x32xf32>, vector<32x64xf32>, vector<16x64xf32> -> vector<16x64xf32>
      %121 = vector.broadcast %1 : vector<1x64xf32> to vector<16x64xf32>
      %122 = arith.addf %120, %121 : vector<16x64xf32>
      %c0_47 = arith.constant 0 : index
      %c0_48 = arith.constant 0 : index
      %c0_49 = arith.constant 0 : index
      %123 = vector.load %arg12[%c0_47, %c0_48, %c0_49] : memref<18x16x64xf32, #tpu.memory_space<vmem>>, vector<1x16x64xf32>
      %124 = vector.shape_cast %123 : vector<1x16x64xf32> to vector<16x64xf32>
      %125 = vector.shape_cast %122 : vector<16x64xf32> to vector<1x16x64xf32>
      tpu.vector_store %arg12[%c0_47, %c0_48, %c0_49], %125 {strides = array<i32>} : memref<18x16x64xf32, #tpu.memory_space<vmem>>, vector<1x16x64xf32>,
    } else {
    }
    %c0_i32_12 = arith.constant 0 : i32
    %16 = arith.cmpi slt, %arg1, %c0_i32_12 : i32
    %17 = arith.extui %16 : i1 to i32
    %c0_i32_13 = arith.constant 0 : i32
    %18 = arith.cmpi ne, %17, %c0_i32_13 : i32
    scf.if %18 {
      %c0_42 = arith.constant 0 : index
      %c0_43 = arith.constant 0 : index
      %c0_44 = arith.constant 0 : index
      %c0_45 = arith.constant 0 : index
      %118 = vector.load %arg4[%c0_42, %c0_43, %c0_44, %c0_45] : memref<1x1x16x32xf32, #tpu.memory_space<vmem>>, vector<1x1x16x32xf32>
      %119 = vector.shape_cast %118 : vector<1x1x16x32xf32> to vector<16x32xf32>
      %cst_46 = arith.constant dense<0.000000e+00> : vector<16x64xf32>
      %120 = tpu.matmul %119, %0, %cst_46 {dimension_numbers = #tpu.dot_dimension_numbers<[1], [0], [0], [1], [0, 0, 1, 1], [], []>} : vector<16x32xf32>, vector<32x64xf32>, vector<16x64xf32> -> vector<16x64xf32>
      %121 = vector.broadcast %1 : vector<1x64xf32> to vector<16x64xf32>
      %122 = arith.addf %120, %121 : vector<16x64xf32>
      %c17 = arith.constant 17 : index
      %c0_47 = arith.constant 0 : index
      %c0_48 = arith.constant 0 : index
      %123 = vector.load %arg12[%c17, %c0_47, %c0_48] : memref<18x16x64xf32, #tpu.memory_space<vmem>>, vector<1x16x64xf32>
      %124 = vector.shape_cast %123 : vector<1x16x64xf32> to vector<16x64xf32>
      %125 = vector.shape_cast %122 : vector<16x64xf32> to vector<1x16x64xf32>
      tpu.vector_store %arg12[%c17, %c0_47, %c0_48], %125 {strides = array<i32>} : memref<18x16x64xf32, #tpu.memory_space<vmem>>, vector<1x16x64xf32>,
    } else {
    }
    %c0_i32_14 = arith.constant 0 : i32
    %19 = arith.cmpi eq, %arg1, %c0_i32_14 : i32
    %20 = arith.extui %19 : i1 to i32
    %c0_i32_15 = arith.constant 0 : i32
    %21 = arith.cmpi ne, %20, %c0_i32_15 : i32
    scf.if %21 {
      %cst_42 = arith.constant 0.000000e+00 : f32
      %118 = vector.broadcast %cst_42 : f32 to vector<1x16x64xf32>
      %c17 = arith.constant 17 : index
      %c0_43 = arith.constant 0 : index
      %c0_44 = arith.constant 0 : index
      %119 = vector.load %arg12[%c17, %c0_43, %c0_44] : memref<18x16x64xf32, #tpu.memory_space<vmem>>, vector<1x16x64xf32>
      tpu.vector_store %arg12[%c17, %c0_43, %c0_44], %118 {strides = array<i32>} : memref<18x16x64xf32, #tpu.memory_space<vmem>>, vector<1x16x64xf32>,
    } else {
    }
    %c0_16 = arith.constant 0 : index
    %c0_17 = arith.constant 0 : index
    %c0_18 = arith.constant 0 : index
    %22 = vector.load %arg7[%c0_16, %c0_17, %c0_18] : memref<3x3x64xf32, #tpu.memory_space<vmem>>, vector<3x3x64xf32>
    %23 = vector.extract_strided_slice %22 {offsets = [1, 1, 0], sizes = [1, 1, 64], strides = [1, 1, 1]} : vector<3x3x64xf32> to vector<1x1x64xf32>
    %24 = vector.shape_cast %23 : vector<1x1x64xf32> to vector<64xf32>
    %25 = vector.shape_cast %24 : vector<64xf32> to vector<1x1x64xf32>
    %26 = vector.broadcast %25 : vector<1x1x64xf32> to vector<16x16x64xf32>
    %27 = arith.mulf %8, %26 : vector<16x16x64xf32>
    %28 = vector.extract_strided_slice %22 {offsets = [1, 0, 0], sizes = [1, 1, 64], strides = [1, 1, 1]} : vector<3x3x64xf32> to vector<1x1x64xf32>
    %29 = vector.shape_cast %28 : vector<1x1x64xf32> to vector<64xf32>
    %30 = vector.shape_cast %29 : vector<64xf32> to vector<1x1x64xf32>
    %31 = vector.broadcast %30 : vector<1x1x64xf32> to vector<16x16x64xf32>
    %32 = arith.mulf %8, %31 : vector<16x16x64xf32>
    %33 = vector.extract_strided_slice %22 {offsets = [1, 2, 0], sizes = [1, 1, 64], strides = [1, 1, 1]} : vector<3x3x64xf32> to vector<1x1x64xf32>
    %34 = vector.shape_cast %33 : vector<1x1x64xf32> to vector<64xf32>
    %35 = vector.shape_cast %34 : vector<64xf32> to vector<1x1x64xf32>
    %36 = vector.broadcast %35 : vector<1x1x64xf32> to vector<16x16x64xf32>
    %37 = arith.mulf %8, %36 : vector<16x16x64xf32>
    %c0_19 = arith.constant 0 : index
    %c0_20 = arith.constant 0 : index
    %c0_21 = arith.constant 0 : index
    %38 = vector.load %arg12[%c0_19, %c0_20, %c0_21] : memref<18x16x64xf32, #tpu.memory_space<vmem>>, vector<16x16x64xf32>
    %39 = vector.extract_strided_slice %22 {offsets = [0, 1, 0], sizes = [1, 1, 64], strides = [1, 1, 1]} : vector<3x3x64xf32> to vector<1x1x64xf32>
    %40 = vector.shape_cast %39 : vector<1x1x64xf32> to vector<64xf32>
    %41 = vector.shape_cast %40 : vector<64xf32> to vector<1x1x64xf32>
    %42 = vector.broadcast %41 : vector<1x1x64xf32> to vector<16x16x64xf32>
    %43 = arith.mulf %38, %42 : vector<16x16x64xf32>
    %44 = arith.addf %27, %43 : vector<16x16x64xf32>
    %45 = vector.extract_strided_slice %22 {offsets = [0, 0, 0], sizes = [1, 1, 64], strides = [1, 1, 1]} : vector<3x3x64xf32> to vector<1x1x64xf32>
    %46 = vector.shape_cast %45 : vector<1x1x64xf32> to vector<64xf32>
    %47 = vector.shape_cast %46 : vector<64xf32> to vector<1x1x64xf32>
    %48 = vector.broadcast %47 : vector<1x1x64xf32> to vector<16x16x64xf32>
    %49 = arith.mulf %38, %48 : vector<16x16x64xf32>
    %50 = arith.addf %32, %49 : vector<16x16x64xf32>
    %51 = vector.extract_strided_slice %22 {offsets = [0, 2, 0], sizes = [1, 1, 64], strides = [1, 1, 1]} : vector<3x3x64xf32> to vector<1x1x64xf32>
    %52 = vector.shape_cast %51 : vector<1x1x64xf32> to vector<64xf32>
    %53 = vector.shape_cast %52 : vector<64xf32> to vector<1x1x64xf32>
    %54 = vector.broadcast %53 : vector<1x1x64xf32> to vector<16x16x64xf32>
    %55 = arith.mulf %38, %54 : vector<16x16x64xf32>
    %56 = arith.addf %37, %55 : vector<16x16x64xf32>
    %c2 = arith.constant 2 : index
    %c0_22 = arith.constant 0 : index
    %c0_23 = arith.constant 0 : index
    %57 = vector.load %arg12[%c2, %c0_22, %c0_23] : memref<18x16x64xf32, #tpu.memory_space<vmem>>, vector<16x16x64xf32>
    %58 = vector.extract_strided_slice %22 {offsets = [2, 1, 0], sizes = [1, 1, 64], strides = [1, 1, 1]} : vector<3x3x64xf32> to vector<1x1x64xf32>
    %59 = vector.shape_cast %58 : vector<1x1x64xf32> to vector<64xf32>
    %60 = vector.shape_cast %59 : vector<64xf32> to vector<1x1x64xf32>
    %61 = vector.broadcast %60 : vector<1x1x64xf32> to vector<16x16x64xf32>
    %62 = arith.mulf %57, %61 : vector<16x16x64xf32>
    %63 = arith.addf %44, %62 : vector<16x16x64xf32>
    %64 = vector.extract_strided_slice %22 {offsets = [2, 0, 0], sizes = [1, 1, 64], strides = [1, 1, 1]} : vector<3x3x64xf32> to vector<1x1x64xf32>
    %65 = vector.shape_cast %64 : vector<1x1x64xf32> to vector<64xf32>
    %66 = vector.shape_cast %65 : vector<64xf32> to vector<1x1x64xf32>
    %67 = vector.broadcast %66 : vector<1x1x64xf32> to vector<16x16x64xf32>
    %68 = arith.mulf %57, %67 : vector<16x16x64xf32>
    %69 = arith.addf %50, %68 : vector<16x16x64xf32>
    %70 = vector.extract_strided_slice %22 {offsets = [2, 2, 0], sizes = [1, 1, 64], strides = [1, 1, 1]} : vector<3x3x64xf32> to vector<1x1x64xf32>
    %71 = vector.shape_cast %70 : vector<1x1x64xf32> to vector<64xf32>
    %72 = vector.shape_cast %71 : vector<64xf32> to vector<1x1x64xf32>
    %73 = vector.broadcast %72 : vector<1x1x64xf32> to vector<16x16x64xf32>
    %74 = arith.mulf %57, %73 : vector<16x16x64xf32>
    %75 = arith.addf %56, %74 : vector<16x16x64xf32>
    %76 = vector.shape_cast %69 : vector<16x16x64xf32> to vector<256x64xf32>
    %c1_i32 = arith.constant 1 : i32
    %77 = tpu.dynamic_rotate %76 by %c1_i32 dim 0 : vector<256x64xf32>, i32 -> vector<256x64xf32>
    %78 = vector.shape_cast %77 : vector<256x64xf32> to vector<16x16x64xf32>
    %79 = vector.shape_cast %75 : vector<16x16x64xf32> to vector<256x64xf32>
    %c255_i32 = arith.constant 255 : i32
    %80 = tpu.dynamic_rotate %79 by %c255_i32 dim 0 : vector<256x64xf32>, i32 -> vector<256x64xf32>
    %81 = vector.shape_cast %80 : vector<256x64xf32> to vector<16x16x64xf32>
    %82 = tpu.iota {dimensions = array<i32: 1>} : vector<16x16x64xi32>
    %c1_i32_24 = arith.constant 1 : i32
    %83 = vector.broadcast %c1_i32_24 : i32 to vector<16x16x64xi32>
    %84 = arith.cmpi sge, %82, %83 : vector<16x16x64xi32>
    %cst_25 = arith.constant 0.000000e+00 : f32
    %85 = vector.broadcast %cst_25 : f32 to vector<16x16x64xf32>
    %86 = arith.select %84, %78, %85 : vector<16x16x64xi1>, vector<16x16x64xf32>
    %87 = arith.addf %63, %86 : vector<16x16x64xf32>
    %c14_i32 = arith.constant 14 : i32
    %88 = vector.broadcast %c14_i32 : i32 to vector<16x16x64xi32>
    %89 = arith.cmpi sle, %82, %88 : vector<16x16x64xi32>
    %cst_26 = arith.constant 0.000000e+00 : f32
    %90 = vector.broadcast %cst_26 : f32 to vector<16x16x64xf32>
    %91 = arith.select %89, %81, %90 : vector<16x16x64xi1>, vector<16x16x64xf32>
    %92 = arith.addf %87, %91 : vector<16x16x64xf32>
    %c0_27 = arith.constant 0 : index
    %c0_28 = arith.constant 0 : index
    %93 = vector.load %arg8[%c0_27, %c0_28] : memref<1x64xf32, #tpu.memory_space<vmem>>, vector<1x64xf32>
    %94 = vector.shape_cast %93 : vector<1x64xf32> to vector<1x1x64xf32>
    %95 = vector.broadcast %94 : vector<1x1x64xf32> to vector<16x16x64xf32>
    %96 = arith.addf %92, %95 : vector<16x16x64xf32>
    %cst_29 = arith.constant 5.000000e-01 : f32
    %97 = vector.broadcast %cst_29 : f32 to vector<16x16x64xf32>
    %98 = arith.mulf %97, %96 : vector<16x16x64xf32>
    %99 = arith.mulf %96, %96 : vector<16x16x64xf32>
    %100 = arith.mulf %99, %96 : vector<16x16x64xf32>
    %cst_30 = arith.constant 4.471500e-02 : f32
    %101 = vector.broadcast %cst_30 : f32 to vector<16x16x64xf32>
    %102 = arith.mulf %101, %100 : vector<16x16x64xf32>
    %103 = arith.addf %96, %102 : vector<16x16x64xf32>
    %cst_31 = arith.constant 0.797884583 : f32
    %104 = vector.broadcast %cst_31 : f32 to vector<16x16x64xf32>
    %105 = arith.mulf %104, %103 : vector<16x16x64xf32>
    %106 = math.tanh %105 : vector<16x16x64xf32>
    %cst_32 = arith.constant 1.000000e+00 : f32
    %107 = vector.broadcast %cst_32 : f32 to vector<16x16x64xf32>
    %108 = arith.addf %107, %106 : vector<16x16x64xf32>
    %109 = arith.mulf %98, %108 : vector<16x16x64xf32>
    %110 = vector.shape_cast %109 : vector<16x16x64xf32> to vector<256x64xf32>
    %c0_33 = arith.constant 0 : index
    %c0_34 = arith.constant 0 : index
    %111 = vector.load %arg9[%c0_33, %c0_34] : memref<64x32xf32, #tpu.memory_space<vmem>>, vector<64x32xf32>
    %cst_35 = arith.constant dense<0.000000e+00> : vector<256x32xf32>
    %112 = tpu.matmul %110, %111, %cst_35 {dimension_numbers = #tpu.dot_dimension_numbers<[1], [0], [0], [1], [0, 0, 1, 1], [], []>} : vector<256x64xf32>, vector<64x32xf32>, vector<256x32xf32> -> vector<256x32xf32>
    %c0_36 = arith.constant 0 : index
    %c0_37 = arith.constant 0 : index
    %113 = vector.load %arg10[%c0_36, %c0_37] : memref<1x32xf32, #tpu.memory_space<vmem>>, vector<1x32xf32>
    %114 = vector.broadcast %113 : vector<1x32xf32> to vector<256x32xf32>
    %115 = arith.addf %112, %114 : vector<256x32xf32>
    %116 = vector.shape_cast %115 : vector<256x32xf32> to vector<1x16x16x32xf32>
    %c0_38 = arith.constant 0 : index
    %c0_39 = arith.constant 0 : index
    %c0_40 = arith.constant 0 : index
    %c0_41 = arith.constant 0 : index
    %117 = vector.load %arg11[%c0_38, %c0_39, %c0_40, %c0_41] : memref<1x16x16x32xf32, #tpu.memory_space<vmem>>, vector<1x16x16x32xf32>
    tpu.vector_store %arg11[%c0_38, %c0_39, %c0_40, %c0_41], %116 {strides = array<i32>} : memref<1x16x16x32xf32, #tpu.memory_space<vmem>>, vector<1x16x16x32xf32>,
    return
  }
  func.func @transform_0(%arg0: i32, %arg1: i32) -> (i32, i32, i32, i32) {
    %c0_i32 = arith.constant 0 : i32
    %c0_i32_0 = arith.constant 0 : i32
    %c0_i32_1 = arith.constant 0 : i32
    return %arg0, %arg1, %c0_i32, %c0_i32_0 : i32, i32, i32, i32
  }
  func.func @transform_1(%arg0: i32, %arg1: i32) -> (i32, i32, i32, i32) {
    %c16_i32 = arith.constant 16 : i32
    %0 = arith.muli %arg1, %c16_i32 : i32
    %c1_i32 = arith.constant 1 : i32
    %1 = arith.subi %0, %c1_i32 : i32
    %c0_i32 = arith.constant 0 : i32
    %2 = arith.maxsi %1, %c0_i32 : i32
    %c0_i32_0 = arith.constant 0 : i32
    %c0_i32_1 = arith.constant 0 : i32
    %c0_i32_2 = arith.constant 0 : i32
    return %arg0, %2, %c0_i32_0, %c0_i32_1 : i32, i32, i32, i32
  }
  func.func @transform_2(%arg0: i32, %arg1: i32) -> (i32, i32, i32, i32) {
    %c1_i32 = arith.constant 1 : i32
    %0 = arith.addi %arg1, %c1_i32 : i32
    %c16_i32 = arith.constant 16 : i32
    %1 = arith.muli %0, %c16_i32 : i32
    %c15_i32 = arith.constant 15 : i32
    %2 = arith.minsi %1, %c15_i32 : i32
    %c0_i32 = arith.constant 0 : i32
    %c0_i32_0 = arith.constant 0 : i32
    %c0_i32_1 = arith.constant 0 : i32
    return %arg0, %2, %c0_i32, %c0_i32_0 : i32, i32, i32, i32
  }
  func.func @transform_3(%arg0: i32, %arg1: i32) -> (i32, i32) {
    %c0_i32 = arith.constant 0 : i32
    %c0_i32_0 = arith.constant 0 : i32
    %c0_i32_1 = arith.constant 0 : i32
    return %c0_i32, %c0_i32_0 : i32, i32
  }
  func.func @transform_4(%arg0: i32, %arg1: i32) -> (i32, i32) {
    %c0_i32 = arith.constant 0 : i32
    %c0_i32_0 = arith.constant 0 : i32
    %c0_i32_1 = arith.constant 0 : i32
    return %c0_i32, %c0_i32_0 : i32, i32
  }
  func.func @transform_5(%arg0: i32, %arg1: i32) -> (i32, i32, i32) {
    %c0_i32 = arith.constant 0 : i32
    %c0_i32_0 = arith.constant 0 : i32
    %c0_i32_1 = arith.constant 0 : i32
    %c0_i32_2 = arith.constant 0 : i32
    return %c0_i32, %c0_i32_0, %c0_i32_1 : i32, i32, i32
  }
  func.func @transform_6(%arg0: i32, %arg1: i32) -> (i32, i32) {
    %c0_i32 = arith.constant 0 : i32
    %c0_i32_0 = arith.constant 0 : i32
    %c0_i32_1 = arith.constant 0 : i32
    return %c0_i32, %c0_i32_0 : i32, i32
  }
  func.func @transform_7(%arg0: i32, %arg1: i32) -> (i32, i32) {
    %c0_i32 = arith.constant 0 : i32
    %c0_i32_0 = arith.constant 0 : i32
    %c0_i32_1 = arith.constant 0 : i32
    return %c0_i32, %c0_i32_0 : i32, i32
  }
  func.func @transform_8(%arg0: i32, %arg1: i32) -> (i32, i32) {
    %c0_i32 = arith.constant 0 : i32
    %c0_i32_0 = arith.constant 0 : i32
    %c0_i32_1 = arith.constant 0 : i32
    return %c0_i32, %c0_i32_0 : i32, i32
  }
  func.func @transform_9(%arg0: i32, %arg1: i32) -> (i32, i32, i32, i32) {
    %c0_i32 = arith.constant 0 : i32
    %c0_i32_0 = arith.constant 0 : i32
    %c0_i32_1 = arith.constant 0 : i32
    return %arg0, %arg1, %c0_i32, %c0_i32_0 : i32, i32, i32, i32
  }
}

</mosaic_0001>

<llo_original>
// kernel: ffn_block2_forward.1
$region0: #{ffn_block2_forward.1}
  #allocation0 [shape = 'u32[]', space=smem, size = 0x4, offset = 0x4, fixed_abs, tag = 'smem constant byte address 0x4 - core index']
  #allocation1 [shape = 'u32[72,128]{1,0:T(1,128)}', space=vmem, size = 0x9000, scoped, tag = 'internal scratch']
  #allocation2 [shape = 'f32[18,16,64]{2,1,0:T(8,128)}', space=vmem, size = 0x24000, scoped, tag = 'scratch operand']
  %s0 = inlined_call_operand.hbm [shape: f32[2,16,16,32], index: 0, kind: input, shape index: {}, may-alias: {0,1,2}]
  %s1 = inlined_call_operand.hbm [shape: f32[2,16,16,32], index: 1, kind: input, shape index: {}, may-alias: {0,1,2}]
  %s2 = inlined_call_operand.hbm [shape: f32[2,16,16,32], index: 2, kind: input, shape index: {}, may-alias: {0,1,2}]
  %s3 = inlined_call_operand.vmem [shape: f32[32,64], index: 3, kind: input, shape index: {}]
  %s4 = inlined_call_operand.vmem [shape: f32[1,64], index: 4, kind: input, shape index: {}]
  %s5 = inlined_call_operand.vmem [shape: f32[3,3,64], index: 5, kind: input, shape index: {}]
  %s6 = inlined_call_operand.vmem [shape: f32[1,64], index: 6, kind: input, shape index: {}]
  %s7 = inlined_call_operand.vmem [shape: f32[64,32], index: 7, kind: input, shape index: {}]
  %s8 = inlined_call_operand.vmem [shape: f32[1,32], index: 8, kind: input, shape index: {}]
  %s9 = inlined_call_operand.hbm [shape: f32[2,16,16,32], index: 9, kind: output, shape index: {}]
  %s10 = sld [smem:[#allocation0]]
  $region97: #{ffn_block2_forward.1} parent=0
    _
  %s12 = ssub.s32 1, %s10
  %s13 = scalar_select 0, %s12, %s10
  $region1: #{ffn_block2_forward.1} parent=0
    #allocation3 [shape = 'u8[262144]{0}', space=vmem, size = 0x40000, scoped, tag = 'input window, operand 0']
    #allocation4 [shape = 's32[2]{0}', space=sflag, size = 0x8, scoped, tag = 'scoped memory for ffn_block2_forward.1']
    #allocation5 [shape = 's32[2]{0}', space=sflag, size = 0x8, scoped, tag = 'scoped memory for ffn_block2_forward.1']
    #allocation6 [shape = 'u8[16384]{0}', space=vmem, size = 0x4000, scoped, tag = 'input window, operand 1']
    #allocation7 [shape = 's32[2]{0}', space=sflag, size = 0x8, scoped, tag = 'scoped memory for ffn_block2_forward.1']
    #allocation8 [shape = 'u8[16384]{0}', space=vmem, size = 0x4000, scoped, tag = 'input window, operand 2']
    #allocation9 [shape = 'u8[262144]{0}', space=vmem, size = 0x40000, scoped, tag = 'output window, operand 0']
    %14 = vsyncpa [#allocation4], 0
    %s15 = scalar_lea.sflag [#allocation4], 1
    %16 = vsyncpa %s15, 0
    %17 = vsyncpa [#allocation7], 0
    %s18 = scalar_lea.sflag [#allocation7], 1
    %19 = vsyncpa %s18, 0
    %20 = vsyncpa [#allocation5], 0
    %s21 = scalar_lea.sflag [#allocation5], 1
    %22 = vsyncpa %s21, 0
    loop: start=0, step=1, limit=4
    $region2: #{ffn_block2_forward.1} parent=1 // loop_pre_header
      _
    $region3: #{ffn_block2_forward.1} parent=1 // loop_header
      %s24 = sphi 0, %s28
      %p25 = scmp.ge.s32.totalorder %s24, 4
      %s31 = sphi 0, %s43
      %s32 = sphi 0, %s39
      %s33 = sphi 0, %s31
      %s34 = sphi 0, %s32
      %s35 = sphi 0, %s33
      %s36 = sphi 0, %s34
      %s48 = sphi 0, %s50
      %s51 = sphi 0, %s48
      %s52 = sphi 0, %s51
      %s68 = sphi 0, %s52
      %s84 = sphi 0, %s86
      %s87 = sphi 0, %s84
      %s88 = sphi 0, %s87
      %s104 = sphi 0, %s88
      %s120 = sphi 0, %s122
      %s123 = sphi 0, %s120
      %s124 = sphi 0, %s123
      %s140 = sphi 0, %s124
      %s144 = sphi 0, %s144
      %s146 = sphi 0, %s144
      %s147 = sphi 0, %s146
      %s161 = sphi 0, %s147
      %s165 = sphi 0, %s165
      %s167 = sphi 0, %s165
      %s168 = sphi 0, %s167
      %s182 = sphi 0, %s168
      %s186 = sphi 0, %s186
      %s188 = sphi 0, %s186
      %s189 = sphi 0, %s188
      %s203 = sphi 0, %s189
      %s207 = sphi 0, %s207
      %s209 = sphi 0, %s207
      %s210 = sphi 0, %s209
      %s224 = sphi 0, %s210
      %s228 = sphi 0, %s228
      %s230 = sphi 0, %s228
      %s231 = sphi 0, %s230
      %s245 = sphi 0, %s231
      %s249 = sphi 0, %s249
      %s251 = sphi 0, %s249
      %s252 = sphi 0, %s251
      %s266 = sphi 0, %s252
      %s274 = sphi 0, %s276
      %s277 = sphi 0, %s274
      %s278 = sphi 0, %s277
      %s294 = sphi 0, %s278
    $region4: #{ffn_block2_forward.1} parent=1 // loop_header_branch
      %27 = sbr.rel (%p25) target = $region8
    $region5: #{ffn_block2_forward.1} parent=1 // loop_body
      %s29 = ssub.s32 %s24, 1
      %s30 = ssub.s32 %s24, 2
      %s37 = sadd.s32 1, %s32
      %p38 = scmp.ge.s32.totalorder %s37, 1
      %s39 = scalar_select %p38, 0, %s37
      %s40 = sadd.s32 1, %s31
      %s41 = scalar_select %p38, %s40, %s31
      %p42 = scmp.ge.s32.totalorder %s41, 2
      %s43 = scalar_select %p42, 0, %s41
      %s44 = ssub.s32 %s31, %s43
      %s45 = ssub.s32 %s32, %s39
      %s46 = sor.u32 %s44, %s45
      %p47 = scmp.eq.s32.totalorder %s46, 0
      %s49 = sadd.s32 %s48, 1
      %s50 = scalar_select %p47, %s48, %s49
      %p53 = pneg %p47
      %p54 = scmp.eq.s32.totalorder %s24, 1
      %p55 = por %p53, %p54
      %p56 = scmp.ne.s32.totalorder %s48, %s51
      %p57 = scmp.eq.s32.totalorder %s24, 0
      %p58 = por %p56, %p57
      %p59 = scmp.ne.s32.totalorder %s48, %s51
      %p60 = scmp.eq.s32.totalorder %s29, 1
      %p61 = por %p59, %p60
      %p62 = scmp.ne.s32.totalorder %s51, %s52
      %p63 = scmp.eq.s32.totalorder %s29, 0
      %p64 = por %p62, %p63
      %p65 = scmp.ne.s32.totalorder %s51, %s52
      %p66 = scmp.eq.s32.totalorder %s30, 1
      %p67 = por %p65, %p66
      %p69 = scmp.ne.s32.totalorder %s52, %s68
      %p70 = scmp.eq.s32.totalorder %s30, 0
      %p71 = por %p69, %p70
      %s72 = smul.u32 %s32, 16
      %s73 = ssub.s32 %s72, 1
      %p74 = scmp.gt.s32.totalorder %s73, 0
      %s75 = scalar_select %p74, %s73, 0
      %s76 = smul.u32 %s39, 16
      %s77 = ssub.s32 %s76, 1
      %p78 = scmp.gt.s32.totalorder %s77, 0
      %s79 = scalar_select %p78, %s77, 0
      %s80 = ssub.s32 %s31, %s43
      %s81 = ssub.s32 %s75, %s79
      %s82 = sor.u32 %s80, %s81
      %p83 = scmp.eq.s32.totalorder %s82, 0
      %s85 = sadd.s32 %s84, 1
      %s86 = scalar_select %p83, %s84, %s85
      %p89 = pneg %p83
      %p90 = scmp.eq.s32.totalorder %s24, 1
      %p91 = por %p89, %p90
      %p92 = scmp.ne.s32.totalorder %s84, %s87
      %p93 = scmp.eq.s32.totalorder %s24, 0
      %p94 = por %p92, %p93
      %p95 = scmp.ne.s32.totalorder %s84, %s87
      %p96 = scmp.eq.s32.totalorder %s29, 1
      %p97 = por %p95, %p96
      %p98 = scmp.ne.s32.totalorder %s87, %s88
      %p99 = scmp.eq.s32.totalorder %s29, 0
      %p100 = por %p98, %p99
      %p101 = scmp.ne.s32.totalorder %s87, %s88
      %p102 = scmp.eq.s32.totalorder %s30, 1
      %p103 = por %p101, %p102
      %p105 = scmp.ne.s32.totalorder %s88, %s104
      %p106 = scmp.eq.s32.totalorder %s30, 0
      %p107 = por %p105, %p106
      %s108 = sadd.s32 %s32, 1
      %s109 = smul.u32 %s108, 16
      %p110 = scmp.lt.s32.totalorder %s109, 15
      %s111 = scalar_select %p110, %s109, 15
      %s112 = sadd.s32 %s39, 1
      %s113 = smul.u32 %s112, 16
      %p114 = scmp.lt.s32.totalorder %s113, 15
      %s115 = scalar_select %p114, %s113, 15
      %s116 = ssub.s32 %s31, %s43
      %s117 = ssub.s32 %s111, %s115
      %s118 = sor.u32 %s116, %s117
      %p119 = scmp.eq.s32.totalorder %s118, 0
      %s121 = sadd.s32 %s120, 1
      %s122 = scalar_select %p119, %s120, %s121
      %p125 = pneg %p119
      %p126 = scmp.eq.s32.totalorder %s24, 1
      %p127 = por %p125, %p126
      %p128 = scmp.ne.s32.totalorder %s120, %s123
      %p129 = scmp.eq.s32.totalorder %s24, 0
      %p130 = por %p128, %p129
      %p131 = scmp.ne.s32.totalorder %s120, %s123
      %p132 = scmp.eq.s32.totalorder %s29, 1
      %p133 = por %p131, %p132
      %p134 = scmp.ne.s32.totalorder %s123, %s124
      %p135 = scmp.eq.s32.totalorder %s29, 0
      %p136 = por %p134, %p135
      %p137 = scmp.ne.s32.totalorder %s123, %s124
      %p138 = scmp.eq.s32.totalorder %s30, 1
      %p139 = por %p137, %p138
      %p141 = scmp.ne.s32.totalorder %s124, %s140
      %p142 = scmp.eq.s32.totalorder %s30, 0
      %p143 = por %p141, %p142
      %s145 = sadd.s32 %s144, 1
      %p148 = scmp.eq.s32.totalorder %s24, 1
      %p149 = scmp.ne.s32.totalorder %s144, %s146
      %p150 = scmp.eq.s32.totalorder %s24, 0
      %p151 = por %p149, %p150
      %p152 = scmp.ne.s32.totalorder %s144, %s146
      %p153 = scmp.eq.s32.totalorder %s29, 1
      %p154 = por %p152, %p153
      %p155 = scmp.ne.s32.totalorder %s146, %s147
      %p156 = scmp.eq.s32.totalorder %s29, 0
      %p157 = por %p155, %p156
      %p158 = scmp.ne.s32.totalorder %s146, %s147
      %p159 = scmp.eq.s32.totalorder %s30, 1
      %p160 = por %p158, %p159
      %p162 = scmp.ne.s32.totalorder %s147, %s161
      %p163 = scmp.eq.s32.totalorder %s30, 0
      %p164 = por %p162, %p163
      %s166 = sadd.s32 %s165, 1
      %p169 = scmp.eq.s32.totalorder %s24, 1
      %p170 = scmp.ne.s32.totalorder %s165, %s167
      %p171 = scmp.eq.s32.totalorder %s24, 0
      %p172 = por %p170, %p171
      %p173 = scmp.ne.s32.totalorder %s165, %s167
      %p174 = scmp.eq.s32.totalorder %s29, 1
      %p175 = por %p173, %p174
      %p176 = scmp.ne.s32.totalorder %s167, %s168
      %p177 = scmp.eq.s32.totalorder %s29, 0
      %p178 = por %p176, %p177
      %p179 = scmp.ne.s32.totalorder %s167, %s168
      %p180 = scmp.eq.s32.totalorder %s30, 1
      %p181 = por %p179, %p180
      %p183 = scmp.ne.s32.totalorder %s168, %s182
      %p184 = scmp.eq.s32.totalorder %s30, 0
      %p185 = por %p183, %p184
      %s187 = sadd.s32 %s186, 1
      %p190 = scmp.eq.s32.totalorder %s24, 1
      %p191 = scmp.ne.s32.totalorder %s186, %s188
      %p192 = scmp.eq.s32.totalorder %s24, 0
      %p193 = por %p191, %p192
      %p194 = scmp.ne.s32.totalorder %s186, %s188
      %p195 = scmp.eq.s32.totalorder %s29, 1
      %p196 = por %p194, %p195
      %p197 = scmp.ne.s32.totalorder %s188, %s189
      %p198 = scmp.eq.s32.totalorder %s29, 0
      %p199 = por %p197, %p198
      %p200 = scmp.ne.s32.totalorder %s188, %s189
      %p201 = scmp.eq.s32.totalorder %s30, 1
      %p202 = por %p200, %p201
      %p204 = scmp.ne.s32.totalorder %s189, %s203
      %p205 = scmp.eq.s32.totalorder %s30, 0
      %p206 = por %p204, %p205
      %s208 = sadd.s32 %s207, 1
      %p211 = scmp.eq.s32.totalorder %s24, 1
      %p212 = scmp.ne.s32.totalorder %s207, %s209
      %p213 = scmp.eq.s32.totalorder %s24, 0
      %p214 = por %p212, %p213
      %p215 = scmp.ne.s32.totalorder %s207, %s209
      %p216 = scmp.eq.s32.totalorder %s29, 1
      %p217 = por %p215, %p216
      %p218 = scmp.ne.s32.totalorder %s209, %s210
      %p219 = scmp.eq.s32.totalorder %s29, 0
      %p220 = por %p218, %p219
      %p221 = scmp.ne.s32.totalorder %s209, %s210
      %p222 = scmp.eq.s32.totalorder %s30, 1
      %p223 = por %p221, %p222
      %p225 = scmp.ne.s32.totalorder %s210, %s224
      %p226 = scmp.eq.s32.totalorder %s30, 0
      %p227 = por %p225, %p226
      %s229 = sadd.s32 %s228, 1
      %p232 = scmp.eq.s32.totalorder %s24, 1
      %p233 = scmp.ne.s32.totalorder %s228, %s230
      %p234 = scmp.eq.s32.totalorder %s24, 0
      %p235 = por %p233, %p234
      %p236 = scmp.ne.s32.totalorder %s228, %s230
      %p237 = scmp.eq.s32.totalorder %s29, 1
      %p238 = por %p236, %p237
      %p239 = scmp.ne.s32.totalorder %s230, %s231
      %p240 = scmp.eq.s32.totalorder %s29, 0
      %p241 = por %p239, %p240
      %p242 = scmp.ne.s32.totalorder %s230, %s231
      %p243 = scmp.eq.s32.totalorder %s30, 1
      %p244 = por %p242, %p243
      %p246 = scmp.ne.s32.totalorder %s231, %s245
      %p247 = scmp.eq.s32.totalorder %s30, 0
      %p248 = por %p246, %p247
      %s250 = sadd.s32 %s249, 1
      %p253 = scmp.eq.s32.totalorder %s24, 1
      %p254 = scmp.ne.s32.totalorder %s249, %s251
      %p255 = scmp.eq.s32.totalorder %s24, 0
      %p256 = por %p254, %p255
      %p257 = scmp.ne.s32.totalorder %s249, %s251
      %p258 = scmp.eq.s32.totalorder %s29, 1
      %p259 = por %p257, %p258
      %p260 = scmp.ne.s32.totalorder %s251, %s252
      %p261 = scmp.eq.s32.totalorder %s29, 0
      %p262 = por %p260, %p261
      %p263 = scmp.ne.s32.totalorder %s251, %s252
      %p264 = scmp.eq.s32.totalorder %s30, 1
      %p265 = por %p263, %p264
      %p267 = scmp.ne.s32.totalorder %s252, %s266
      %p268 = scmp.eq.s32.totalorder %s30, 0
      %p269 = por %p267, %p268
      %s270 = ssub.s32 %s31, %s43
      %s271 = ssub.s32 %s32, %s39
      %s272 = sor.u32 %s270, %s271
      %p273 = scmp.eq.s32.totalorder %s272, 0
      %s275 = sadd.s32 %s274, 1
      %s276 = scalar_select %p273, %s274, %s275
      %p279 = pneg %p273
      %p280 = scmp.eq.s32.totalorder %s24, 1
      %p281 = por %p279, %p280
      %p282 = scmp.ne.s32.totalorder %s274, %s277
      %p283 = scmp.eq.s32.totalorder %s24, 0
      %p284 = por %p282, %p283
      %p285 = scmp.ne.s32.totalorder %s274, %s277
      %p286 = scmp.eq.s32.totalorder %s29, 1
      %p287 = por %p285, %p286
      %p288 = scmp.ne.s32.totalorder %s277, %s278
      %p289 = scmp.eq.s32.totalorder %s29, 0
      %p290 = por %p288, %p289
      %p291 = scmp.ne.s32.totalorder %s277, %s278
      %p292 = scmp.eq.s32.totalorder %s30, 1
      %p293 = por %p291, %p292
      %p295 = scmp.ne.s32.totalorder %s278, %s294
      %p296 = scmp.eq.s32.totalorder %s30, 0
      %p297 = por %p295, %p296
      %p298 = scmp.le.s32.totalorder 1, %s24
      %p299 = scmp.lt.s32.totalorder %s24, 3
      %p300 = pnand %p298, %p299
      %p301 = pneg %p300
      // Predicated region
      $region9: #{ffn_block2_forward.1} parent=5 // pred_check
        _
      $region10: #{ffn_block2_forward.1} parent=5 // pred_check_branch
        %303 = sbr.rel (%p300) target = $region12
      $region11: #{ffn_block2_forward.1} parent=5 // pred_region
        %s304 = ssub.s32 %s24, 1
        // Predicated region
        $region13: #{ffn_block2_forward.1} parent=11 // pred_check
          %p305 = pneg %p157
        $region14: #{ffn_block2_forward.1} parent=11 // pred_check_branch
          %307 = sbr.rel (%p305) target = $region16
        $region15: #{ffn_block2_forward.1} parent=11 // pred_region
          _
        $region16: #{ffn_block2_forward.1} parent=11 // pred_fallthru
          _
        // Predicated region
        $region17: #{ffn_block2_forward.1} parent=11 // pred_check
          %p308 = pneg %p178
        $region18: #{ffn_block2_forward.1} parent=11 // pred_check_branch
          %310 = sbr.rel (%p308) target = $region20
        $region19: #{ffn_block2_forward.1} parent=11 // pred_region
          _
        $region20: #{ffn_block2_forward.1} parent=11 // pred_fallthru
          _
        // Predicated region
        $region21: #{ffn_block2_forward.1} parent=11 // pred_check
          %p311 = pneg %p199
        $region22: #{ffn_block2_forward.1} parent=11 // pred_check_branch
          %313 = sbr.rel (%p311) target = $region24
        $region23: #{ffn_block2_forward.1} parent=11 // pred_region
          _
        $region24: #{ffn_block2_forward.1} parent=11 // pred_fallthru
          _
        // Predicated region
        $region25: #{ffn_block2_forward.1} parent=11 // pred_check
          %p314 = pneg %p220
        $region26: #{ffn_block2_forward.1} parent=11 // pred_check_branch
          %316 = sbr.rel (%p314) target = $region28
        $region27: #{ffn_block2_forward.1} parent=11 // pred_region
          _
        $region28: #{ffn_block2_forward.1} parent=11 // pred_fallthru
          _
        // Predicated region
        $region29: #{ffn_block2_forward.1} parent=11 // pred_check
          %p317 = pneg %p241
        $region30: #{ffn_block2_forward.1} parent=11 // pred_check_branch
          %319 = sbr.rel (%p317) target = $region32
        $region31: #{ffn_block2_forward.1} parent=11 // pred_region
          _
        $region32: #{ffn_block2_forward.1} parent=11 // pred_fallthru
          _
        // Predicated region
        $region33: #{ffn_block2_forward.1} parent=11 // pred_check
          %p320 = pneg %p262
        $region34: #{ffn_block2_forward.1} parent=11 // pred_check_branch
          %322 = sbr.rel (%p320) target = $region36
        $region35: #{ffn_block2_forward.1} parent=11 // pred_region
          _
        $region36: #{ffn_block2_forward.1} parent=11 // pred_fallthru
          _
      $region12: #{ffn_block2_forward.1} parent=5 // pred_fallthru
        _
      %p323 = scmp.lt.s32.totalorder %s24, 2
      // Predicated region
      $region37: #{ffn_block2_forward.1} parent=5 // pred_check
        %p324 = pneg %p323
      $region38: #{ffn_block2_forward.1} parent=5 // pred_check_branch
        %326 = sbr.rel (%p324) target = $region40
      $region39: #{ffn_block2_forward.1} parent=5 // pred_region
        // Predicated region
        $region41: #{ffn_block2_forward.1} parent=39 // pred_check
          %p327 = pneg %p58
        $region42: #{ffn_block2_forward.1} parent=39 // pred_check_branch
          %329 = sbr.rel (%p327) target = $region44
        $region43: #{ffn_block2_forward.1} parent=39 // pred_region
          %s330 = sand.u32 %s48, 1
          %s331 = scalar_lea.sflag [#allocation4], %s330
          %s332 = sand.u32 %s48, 1
          %s333 = smul.addr %s332, 256
          %s334 = scalar_lea.vmem [#allocation3], %s333
          %s335 = smul.u32 16, %s32
          %337 = vsyncadd %s331, 0
          %s338 = smul.addr %s335, 2
          %s339 = smul.addr %s31, 32
          %s340 = sadd.s32 %s338, %s339
          %s341 = smul.addr %s340, 8
          %s342 = scalar_lea.hbm %s0, %s341
          %s343 = sshll.u32 %s342, 4
          %s344 = int_to_ptr.hbm [resolvable:$true] %s343
          %s345 = sshll.u32 %s334, 4
          %s346 = int_to_ptr.vmem [resolvable:$true] %s345
          %351 = dma.hbm_to_vmem [thread:$0]  %s344, 4096, %s346, %s331, 128, 128, 8
        $region44: #{ffn_block2_forward.1} parent=39 // pred_fallthru
          _
        // Predicated region
        $region45: #{ffn_block2_forward.1} parent=39 // pred_check
          %p352 = pneg %p94
        $region46: #{ffn_block2_forward.1} parent=39 // pred_check_branch
          %354 = sbr.rel (%p352) target = $region48
        $region47: #{ffn_block2_forward.1} parent=39 // pred_region
          %s355 = sand.u32 %s24, 1
          %s356 = scalar_lea.sflag [#allocation7], %s355
          %s357 = sand.u32 %s84, 1
          %s358 = smul.addr %s357, 16
          %s359 = scalar_lea.vmem [#allocation6], %s358
          %s360 = smul.u32 %s32, 16
          %s361 = ssub.s32 %s360, 1
          %p362 = scmp.gt.s32.totalorder %s361, 0
          %s363 = scalar_select %p362, %s361, 0
          %365 = vsyncadd %s356, 0
          %s366 = smul.addr %s363, 2
          %s367 = smul.addr %s31, 32
          %s368 = sadd.s32 %s366, %s367
          %s369 = smul.addr %s368, 8
          %s370 = scalar_lea.hbm %s1, %s369
          %s371 = sshll.u32 %s370, 4
          %s372 = int_to_ptr.hbm [resolvable:$true] %s371
          %s373 = sshll.u32 %s359, 4
          %s374 = int_to_ptr.vmem [resolvable:$true] %s373
          %379 = dma.hbm_to_vmem [thread:$0]  %s372, 256, %s374, %s356, 128, 128, 8
        $region48: #{ffn_block2_forward.1} parent=39 // pred_fallthru
          _
        // Predicated region
        $region49: #{ffn_block2_forward.1} parent=39 // pred_check
          %p380 = pneg %p130
        $region50: #{ffn_block2_forward.1} parent=39 // pred_check_branch
          %382 = sbr.rel (%p380) target = $region52
        $region51: #{ffn_block2_forward.1} parent=39 // pred_region
          %s383 = sand.u32 %s24, 1
          %s384 = scalar_lea.sflag [#allocation7], %s383
          %s385 = sand.u32 %s120, 1
          %s386 = smul.addr %s385, 16
          %s387 = scalar_lea.vmem [#allocation8], %s386
          %s388 = sadd.s32 %s32, 1
          %s389 = smul.u32 %s388, 16
          %p390 = scmp.lt.s32.totalorder %s389, 15
          %s391 = scalar_select %p390, %s389, 15
          %393 = vsyncadd %s384, 0
          %s394 = smul.addr %s391, 2
          %s395 = smul.addr %s31, 32
          %s396 = sadd.s32 %s394, %s395
          %s397 = smul.addr %s396, 8
          %s398 = scalar_lea.hbm %s2, %s397
          %s399 = sshll.u32 %s398, 4
          %s400 = int_to_ptr.hbm [resolvable:$true] %s399
          %s401 = sshll.u32 %s387, 4
          %s402 = int_to_ptr.vmem [resolvable:$true] %s401
          %407 = dma.hbm_to_vmem [thread:$0]  %s400, 256, %s402, %s384, 128, 128, 8
        $region52: #{ffn_block2_forward.1} parent=39 // pred_fallthru
          _
      $region40: #{ffn_block2_forward.1} parent=5 // pred_fallthru
        _
      %p408 = scmp.le.s32.totalorder 1, %s24
      %p409 = scmp.lt.s32.totalorder %s24, 3
      %p410 = pnand %p408, %p409
      %p411 = pneg %p410
      // Predicated region
      $region53: #{ffn_block2_forward.1} parent=5 // pred_check
        _
      $region54: #{ffn_block2_forward.1} parent=5 // pred_check_branch
        %413 = sbr.rel (%p410) target = $region56
      $region55: #{ffn_block2_forward.1} parent=5 // pred_region
        %s414 = ssub.s32 %s24, 1
        %s415 = sand.u32 %s51, 1
        %s416 = scalar_lea.sflag [#allocation4], %s415
        %s417 = sand.u32 %s51, 1
        %s418 = smul.addr %s417, 256
        %s419 = scalar_lea.vmem [#allocation3], %s418
        // Predicated region
        $region57: #{ffn_block2_forward.1} parent=55 // pred_check
          %p420 = pneg %p64
        $region58: #{ffn_block2_forward.1} parent=55 // pred_check_branch
          %422 = sbr.rel (%p420) target = $region60
        $region59: #{ffn_block2_forward.1} parent=55 // pred_region
          %424 = dma.done %s416, 4096
        $region60: #{ffn_block2_forward.1} parent=55 // pred_fallthru
          _
        %s425 = sand.u32 %s29, 1
        %s426 = scalar_lea.sflag [#allocation7], %s425
        %s427 = sand.u32 %s87, 1
        %s428 = smul.addr %s427, 16
        %s429 = scalar_lea.vmem [#allocation6], %s428
        // Predicated region
        $region61: #{ffn_block2_forward.1} parent=55 // pred_check
          %p430 = pneg %p100
        $region62: #{ffn_block2_forward.1} parent=55 // pred_check_branch
          %432 = sbr.rel (%p430) target = $region64
        $region63: #{ffn_block2_forward.1} parent=55 // pred_region
          %434 = dma.done %s426, 256
        $region64: #{ffn_block2_forward.1} parent=55 // pred_fallthru
          _
        %s435 = sand.u32 %s29, 1
        %s436 = scalar_lea.sflag [#allocation7], %s435
        %s437 = sand.u32 %s123, 1
        %s438 = smul.addr %s437, 16
        %s439 = scalar_lea.vmem [#allocation8], %s438
        // Predicated region
        $region65: #{ffn_block2_forward.1} parent=55 // pred_check
          %p440 = pneg %p136
        $region66: #{ffn_block2_forward.1} parent=55 // pred_check_branch
          %442 = sbr.rel (%p440) target = $region68
        $region67: #{ffn_block2_forward.1} parent=55 // pred_region
          %444 = dma.done %s436, 256
        $region68: #{ffn_block2_forward.1} parent=55 // pred_fallthru
          _
        %s445 = sand.u32 %s51, 1
        %s446 = scalar_lea.sflag [#allocation4], %s445
        %s447 = sand.u32 %s51, 1
        %s448 = smul.addr %s447, 256
        %s449 = scalar_lea.vmem [#allocation3], %s448
        %p450 = pneg %p64
        %p451 = pneg %p61
        %s452 = sand.u32 %s29, 1
        %s453 = scalar_lea.sflag [#allocation7], %s452
        %s454 = sand.u32 %s87, 1
        %s455 = smul.addr %s454, 16
        %s456 = scalar_lea.vmem [#allocation6], %s455
        %p457 = pneg %p100
        %p458 = pneg %p97
        %s459 = sand.u32 %s29, 1
        %s460 = scalar_lea.sflag [#allocation7], %s459
        %s461 = sand.u32 %s123, 1
        %s462 = smul.addr %s461, 16
        %s463 = scalar_lea.vmem [#allocation8], %s462
        %p464 = pneg %p136
        %p465 = pneg %p133
        %p466 = pneg %p157
        %p467 = pneg %p154
        %p468 = pneg %p178
        %p469 = pneg %p175
        %p470 = pneg %p199
        %p471 = pneg %p196
        %p472 = pneg %p220
        %p473 = pneg %p217
        %p474 = pneg %p241
        %p475 = pneg %p238
        %p476 = pneg %p262
        %p477 = pneg %p259
        %p478 = pneg %p290
        %p479 = pneg %p287
        %s480 = sand.u32 %s277, 1
        %s481 = scalar_lea.sflag [#allocation5], %s480
        %s482 = sand.u32 %s277, 1
        %s483 = smul.addr %s482, 256
        %s484 = scalar_lea.vmem [#allocation9], %s483
        %s485 = smul.u32 16, %s34
        %s486 = smul.u32 %s34, 16
        %s487 = ssub.s32 %s486, 1
        %p488 = scmp.gt.s32.totalorder %s487, 0
        %s489 = scalar_select %p488, %s487, 0
        %s490 = sadd.s32 %s34, 1
        %s491 = smul.u32 %s490, 16
        %p492 = scmp.lt.s32.totalorder %s491, 15
        %s493 = scalar_select %p492, %s491, 15
        %s494 = smul.u32 16, %s34
        %v495 = vld [vmem:[%s3] sm:$0xff]
        %v496 = vld [vmem:[%s3 + $0x8] sm:$0xff]
        %v497 = vld [vmem:[%s3 + $0x10] sm:$0xff]
        %v498 = vld [vmem:[%s3 + $0x18] sm:$0xff]
        %v499 = vld [vmem:[%s4] sm:$0x1]
        %v500 = vld [vmem:[%s419] sm:$0xff]
        %v501 = vld [vmem:[%s419 + $0x8] sm:$0xff]
        %v502 = vld [vmem:[%s419 + $0x10] sm:$0xff]
        %v503 = vld [vmem:[%s419 + $0x18] sm:$0xff]
        %v504 = vld [vmem:[%s419 + $0x20] sm:$0xff]
        %v505 = vld [vmem:[%s419 + $0x28] sm:$0xff]
        %v506 = vld [vmem:[%s419 + $0x30] sm:$0xff]
        %v507 = vld [vmem:[%s419 + $0x38] sm:$0xff]
        %v508 = vld [vmem:[%s419 + $0x40] sm:$0xff]
        %v509 = vld [vmem:[%s419 + $0x48] sm:$0xff]
        %v510 = vld [vmem:[%s419 + $0x50] sm:$0xff]
        %v511 = vld [vmem:[%s419 + $0x58] sm:$0xff]
        %v512 = vld [vmem:[%s419 + $0x60] sm:$0xff]
        %v513 = vld [vmem:[%s419 + $0x68] sm:$0xff]
        %v514 = vld [vmem:[%s419 + $0x70] sm:$0xff]
        %v515 = vld [vmem:[%s419 + $0x78] sm:$0xff]
        %v516 = vld [vmem:[%s419 + $0x80] sm:$0xff]
        %v517 = vld [vmem:[%s419 + $0x88] sm:$0xff]
        %v518 = vld [vmem:[%s419 + $0x90] sm:$0xff]
        %v519 = vld [vmem:[%s419 + $0x98] sm:$0xff]
        %v520 = vld [vmem:[%s419 + $0xa0] sm:$0xff]
        %v521 = vld [vmem:[%s419 + $0xa8] sm:$0xff]
        %v522 = vld [vmem:[%s419 + $0xb0] sm:$0xff]
        %v523 = vld [vmem:[%s419 + $0xb8] sm:$0xff]
        %v524 = vld [vmem:[%s419 + $0xc0] sm:$0xff]
        %v525 = vld [vmem:[%s419 + $0xc8] sm:$0xff]
        %v526 = vld [vmem:[%s419 + $0xd0] sm:$0xff]
        %v527 = vld [vmem:[%s419 + $0xd8] sm:$0xff]
        %v528 = vld [vmem:[%s419 + $0xe0] sm:$0xff]
        %v529 = vld [vmem:[%s419 + $0xe8] sm:$0xff]
        %v530 = vld [vmem:[%s419 + $0xf0] sm:$0xff]
        %v531 = vld [vmem:[%s419 + $0xf8] sm:$0xff]
        %v533 = vperm.slane %v499, 0
        %vm535 = vcmask 261120
        %v537 = vsel %vm535, %v500, 0
        %v540 = vsel %vm535, %v501, 0
        %v543 = vsel %vm535, %v502, 0
        %v546 = vsel %vm535, %v503, 0
        %v549 = vsel %vm535, %v504, 0
        %v552 = vsel %vm535, %v505, 0
        %v555 = vsel %vm535, %v506, 0
        %v558 = vsel %vm535, %v507, 0
        %v561 = vsel %vm535, %v508, 0
        %v564 = vsel %vm535, %v509, 0
        %v567 = vsel %vm535, %v510, 0
        %v570 = vsel %vm535, %v511, 0
        %v573 = vsel %vm535, %v512, 0
        %v576 = vsel %vm535, %v513, 0
        %v579 = vsel %vm535, %v514, 0
        %v582 = vsel %vm535, %v515, 0
        %v585 = vsel %vm535, %v516, 0
        %v588 = vsel %vm535, %v517, 0
        %v591 = vsel %vm535, %v518, 0
        %v594 = vsel %vm535, %v519, 0
        %v597 = vsel %vm535, %v520, 0
        %v600 = vsel %vm535, %v521, 0
        %v603 = vsel %vm535, %v522, 0
        %v606 = vsel %vm535, %v523, 0
        %v609 = vsel %vm535, %v524, 0
        %v612 = vsel %vm535, %v525, 0
        %v615 = vsel %vm535, %v526, 0
        %v618 = vsel %vm535, %v527, 0
        %v621 = vsel %vm535, %v528, 0
        %v624 = vsel %vm535, %v529, 0
        %v627 = vsel %vm535, %v530, 0
        %v630 = vsel %vm535, %v531, 0
        %632 = vmatpush.msra.mxu0 0.0
        %633 = vmatpush.msra.mxu0 0.0
        %634 = vmatpush.msra.mxu0 0.0
        %635 = vmatpush.msra.mxu0 0.0
        %636 = vmatpush.msra.mxu0 0.0
        %637 = vmatpush.msra.mxu0 0.0
        %638 = vmatpush.msra.mxu0 0.0
        %639 = vmatpush.msra.mxu0 0.0
        %640 = vmatpush.msra.mxu0 0.0
        %641 = vmatpush.msra.mxu0 0.0
        %642 = vmatpush.msra.mxu0 0.0
        %643 = vmatpush.msra.mxu0 0.0
        %644 = vmatpush.msra.mxu0 %v498
        %645 = vmatpush.msra.mxu0 %v497
        %646 = vmatpush.msra.mxu0 %v496
        %647 = vmatpush.msra.mxu0 %v495
        %648 = vmatmul.f32.gmra.mxu0 %v537
        %v649 = vpop.f32.mrf.mxu0
        %v650 = vadd.f32 %v533, %v649
        %651 = vmatmul.f32.gmra.mxu0 %v540
        %v652 = vpop.f32.mrf.mxu0
        %v653 = vadd.f32 %v533, %v652
        %654 = vmatmul.f32.gmra.mxu0 %v543
        %v655 = vpop.f32.mrf.mxu0
        %v656 = vadd.f32 %v533, %v655
        %657 = vmatmul.f32.gmra.mxu0 %v546
        %v658 = vpop.f32.mrf.mxu0
        %v659 = vadd.f32 %v533, %v658
        %660 = vmatmul.f32.gmra.mxu0 %v549
        %v661 = vpop.f32.mrf.mxu0
        %v662 = vadd.f32 %v533, %v661
        %663 = vmatmul.f32.gmra.mxu0 %v552
        %v664 = vpop.f32.mrf.mxu0
        %v665 = vadd.f32 %v533, %v664
        %666 = vmatmul.f32.gmra.mxu0 %v555
        %v667 = vpop.f32.mrf.mxu0
        %v668 = vadd.f32 %v533, %v667
        %669 = vmatmul.f32.gmra.mxu0 %v558
        %v670 = vpop.f32.mrf.mxu0
        %v671 = vadd.f32 %v533, %v670
        %672 = vmatmul.f32.gmra.mxu0 %v561
        %v673 = vpop.f32.mrf.mxu0
        %v674 = vadd.f32 %v533, %v673
        %675 = vmatmul.f32.gmra.mxu0 %v564
        %v676 = vpop.f32.mrf.mxu0
        %v677 = vadd.f32 %v533, %v676
        %678 = vmatmul.f32.gmra.mxu0 %v567
        %v679 = vpop.f32.mrf.mxu0
        %v680 = vadd.f32 %v533, %v679
        %681 = vmatmul.f32.gmra.mxu0 %v570
        %v682 = vpop.f32.mrf.mxu0
        %v683 = vadd.f32 %v533, %v682
        %684 = vmatmul.f32.gmra.mxu0 %v573
        %v685 = vpop.f32.mrf.mxu0
        %v686 = vadd.f32 %v533, %v685
        %687 = vmatmul.f32.gmra.mxu0 %v576
        %v688 = vpop.f32.mrf.mxu0
        %v689 = vadd.f32 %v533, %v688
        %690 = vmatmul.f32.gmra.mxu0 %v579
        %v691 = vpop.f32.mrf.mxu0
        %v692 = vadd.f32 %v533, %v691
        %693 = vmatmul.f32.gmra.mxu0 %v582
        %v694 = vpop.f32.mrf.mxu0
        %v695 = vadd.f32 %v533, %v694
        %696 = vmatmul.f32.gmra.mxu0 %v585
        %v697 = vpop.f32.mrf.mxu0
        %v698 = vadd.f32 %v533, %v697
        %699 = vmatmul.f32.gmra.mxu0 %v588
        %v700 = vpop.f32.mrf.mxu0
        %v701 = vadd.f32 %v533, %v700
        %702 = vmatmul.f32.gmra.mxu0 %v591
        %v703 = vpop.f32.mrf.mxu0
        %v704 = vadd.f32 %v533, %v703
        %705 = vmatmul.f32.gmra.mxu0 %v594
        %v706 = vpop.f32.mrf.mxu0
        %v707 = vadd.f32 %v533, %v706
        %708 = vmatmul.f32.gmra.mxu0 %v597
        %v709 = vpop.f32.mrf.mxu0
        %v710 = vadd.f32 %v533, %v709
        %711 = vmatmul.f32.gmra.mxu0 %v600
        %v712 = vpop.f32.mrf.mxu0
        %v713 = vadd.f32 %v533, %v712
        %714 = vmatmul.f32.gmra.mxu0 %v603
        %v715 = vpop.f32.mrf.mxu0
        %v716 = vadd.f32 %v533, %v715
        %717 = vmatmul.f32.gmra.mxu0 %v606
        %v718 = vpop.f32.mrf.mxu0
        %v719 = vadd.f32 %v533, %v718
        %720 = vmatmul.f32.gmra.mxu0 %v609
        %v721 = vpop.f32.mrf.mxu0
        %v722 = vadd.f32 %v533, %v721
        %723 = vmatmul.f32.gmra.mxu0 %v612
        %v724 = vpop.f32.mrf.mxu0
        %v725 = vadd.f32 %v533, %v724
        %726 = vmatmul.f32.gmra.mxu0 %v615
        %v727 = vpop.f32.mrf.mxu0
        %v728 = vadd.f32 %v533, %v727
        %729 = vmatmul.f32.gmra.mxu0 %v618
        %v730 = vpop.f32.mrf.mxu0
        %v731 = vadd.f32 %v533, %v730
        %732 = vmatmul.f32.gmra.mxu0 %v621
        %v733 = vpop.f32.mrf.mxu0
        %v734 = vadd.f32 %v533, %v733
        %735 = vmatmul.f32.gmra.mxu0 %v624
        %v736 = vpop.f32.mrf.mxu0
        %v737 = vadd.f32 %v533, %v736
        %738 = vmatmul.f32.gmra.mxu0 %v627
        %v739 = vpop.f32.mrf.mxu0
        %v740 = vadd.f32 %v533, %v739
        %741 = vmatmul.f32.gmra.mxu0 %v630
        %v742 = vpop.f32.mrf.mxu0
        %v743 = vadd.f32 %v533, %v742
        %744 = vdwg.mxu0
        %s745 = scalar_lea.vmem [#allocation2], 16
        %vm746 = vcmask 523264
        %747 = vst.msk [vmem:[%s745] sm:$0xff] %vm746, %v650
        %748 = vst.msk [vmem:[%s745 + $0x8] sm:$0xff] %vm746, %v653
        %749 = vst.msk [vmem:[%s745 + $0x10] sm:$0xff] %vm746, %v656
        %750 = vst.msk [vmem:[%s745 + $0x18] sm:$0xff] %vm746, %v659
        %751 = vst.msk [vmem:[%s745 + $0x20] sm:$0xff] %vm746, %v662
        %752 = vst.msk [vmem:[%s745 + $0x28] sm:$0xff] %vm746, %v665
        %753 = vst.msk [vmem:[%s745 + $0x30] sm:$0xff] %vm746, %v668
        %754 = vst.msk [vmem:[%s745 + $0x38] sm:$0xff] %vm746, %v671
        %755 = vst.msk [vmem:[%s745 + $0x40] sm:$0xff] %vm746, %v674
        %756 = vst.msk [vmem:[%s745 + $0x48] sm:$0xff] %vm746, %v677
        %757 = vst.msk [vmem:[%s745 + $0x50] sm:$0xff] %vm746, %v680
        %758 = vst.msk [vmem:[%s745 + $0x58] sm:$0xff] %vm746, %v683
        %759 = vst.msk [vmem:[%s745 + $0x60] sm:$0xff] %vm746, %v686
        %760 = vst.msk [vmem:[%s745 + $0x68] sm:$0xff] %vm746, %v689
        %761 = vst.msk [vmem:[%s745 + $0x70] sm:$0xff] %vm746, %v692
        %762 = vst.msk [vmem:[%s745 + $0x78] sm:$0xff] %vm746, %v695
        %763 = vst.msk [vmem:[%s745 + $0x80] sm:$0xff] %vm746, %v698
        %764 = vst.msk [vmem:[%s745 + $0x88] sm:$0xff] %vm746, %v701
        %765 = vst.msk [vmem:[%s745 + $0x90] sm:$0xff] %vm746, %v704
        %766 = vst.msk [vmem:[%s745 + $0x98] sm:$0xff] %vm746, %v707
        %767 = vst.msk [vmem:[%s745 + $0xa0] sm:$0xff] %vm746, %v710
        %768 = vst.msk [vmem:[%s745 + $0xa8] sm:$0xff] %vm746, %v713
        %769 = vst.msk [vmem:[%s745 + $0xb0] sm:$0xff] %vm746, %v716
        %770 = vst.msk [vmem:[%s745 + $0xb8] sm:$0xff] %vm746, %v719
        %771 = vst.msk [vmem:[%s745 + $0xc0] sm:$0xff] %vm746, %v722
        %772 = vst.msk [vmem:[%s745 + $0xc8] sm:$0xff] %vm746, %v725
        %773 = vst.msk [vmem:[%s745 + $0xd0] sm:$0xff] %vm746, %v728
        %774 = vst.msk [vmem:[%s745 + $0xd8] sm:$0xff] %vm746, %v731
        %775 = vst.msk [vmem:[%s745 + $0xe0] sm:$0xff] %vm746, %v734
        %776 = vst.msk [vmem:[%s745 + $0xe8] sm:$0xff] %vm746, %v737
        %777 = vst.msk [vmem:[%s745 + $0xf0] sm:$0xff] %vm746, %v740
        %778 = vst.msk [vmem:[%s745 + $0xf8] sm:$0xff] %vm746, %v743
        %p779 = scmp.eq.s32.totalorder %s34, 0
        // Predicated region
        $region69: #{ffn_block2_forward.1} parent=55 // pred_check
          %p780 = pneg %p779
        $region70: #{ffn_block2_forward.1} parent=55 // pred_check_branch
          %782 = sbr.rel (%p780) target = $region72
        $region71: #{ffn_block2_forward.1} parent=55 // pred_region
          %783 = vst.msk [vmem:[#allocation2] sm:$0xff] %vm746, 0.0
          %784 = vst.msk [vmem:[#allocation2 + $0x8] sm:$0xff] %vm746, 0.0
        $region72: #{ffn_block2_forward.1} parent=55 // pred_fallthru
          _
        %p785 = scmp.gt.s32.totalorder %s34, 0
        // Predicated region
        $region73: #{ffn_block2_forward.1} parent=55 // pred_check
          %p786 = pneg %p785
        $region74: #{ffn_block2_forward.1} parent=55 // pred_check_branch
          %788 = sbr.rel (%p786) target = $region76
        $region75: #{ffn_block2_forward.1} parent=55 // pred_region
          %v789 = vld [vmem:[%s429] sm:$0xff]
          %v790 = vld [vmem:[%s429 + $0x8] sm:$0xff]
          %v792 = vsel %vm535, %v789, 0
          %v795 = vsel %vm535, %v790, 0
          %797 = vmatpush.msra.mxu0 0.0
          %798 = vmatpush.msra.mxu0 0.0
          %799 = vmatpush.msra.mxu0 0.0
          %800 = vmatpush.msra.mxu0 0.0
          %801 = vmatpush.msra.mxu0 0.0
          %802 = vmatpush.msra.mxu0 0.0
          %803 = vmatpush.msra.mxu0 0.0
          %804 = vmatpush.msra.mxu0 0.0
          %805 = vmatpush.msra.mxu0 0.0
          %806 = vmatpush.msra.mxu0 0.0
          %807 = vmatpush.msra.mxu0 0.0
          %808 = vmatpush.msra.mxu0 0.0
          %809 = vmatpush.msra.mxu0 %v498
          %810 = vmatpush.msra.mxu0 %v497
          %811 = vmatpush.msra.mxu0 %v496
          %812 = vmatpush.msra.mxu0 %v495
          %813 = vmatmul.f32.gmra.mxu0 %v792
          %v814 = vpop.f32.mrf.mxu0
          %v815 = vadd.f32 %v533, %v814
          %816 = vmatmul.f32.gmra.mxu0 %v795
          %v817 = vpop.f32.mrf.mxu0
          %v818 = vadd.f32 %v533, %v817
          %819 = vdwg.mxu0
          %820 = vst.msk [vmem:[#allocation2] sm:$0xff] %vm746, %v815
          %821 = vst.msk [vmem:[#allocation2 + $0x8] sm:$0xff] %vm746, %v818
        $region76: #{ffn_block2_forward.1} parent=55 // pred_fallthru
          _
        %p822 = scmp.lt.s32.totalorder %s34, 0
        // Predicated region
        $region77: #{ffn_block2_forward.1} parent=55 // pred_check
          %p823 = pneg %p822
        $region78: #{ffn_block2_forward.1} parent=55 // pred_check_branch
          %825 = sbr.rel (%p823) target = $region80
        $region79: #{ffn_block2_forward.1} parent=55 // pred_region
          %v826 = vld [vmem:[%s439] sm:$0xff]
          %v827 = vld [vmem:[%s439 + $0x8] sm:$0xff]
          %v829 = vsel %vm535, %v826, 0
          %v832 = vsel %vm535, %v827, 0
          %834 = vmatpush.msra.mxu0 0.0
          %835 = vmatpush.msra.mxu0 0.0
          %836 = vmatpush.msra.mxu0 0.0
          %837 = vmatpush.msra.mxu0 0.0
          %838 = vmatpush.msra.mxu0 0.0
          %839 = vmatpush.msra.mxu0 0.0
          %840 = vmatpush.msra.mxu0 0.0
          %841 = vmatpush.msra.mxu0 0.0
          %842 = vmatpush.msra.mxu0 0.0
          %843 = vmatpush.msra.mxu0 0.0
          %844 = vmatpush.msra.mxu0 0.0
          %845 = vmatpush.msra.mxu0 0.0
          %846 = vmatpush.msra.mxu0 %v498
          %847 = vmatpush.msra.mxu0 %v497
          %848 = vmatpush.msra.mxu0 %v496
          %849 = vmatpush.msra.mxu0 %v495
          %850 = vmatmul.f32.gmra.mxu0 %v829
          %v851 = vpop.f32.mrf.mxu0
          %v852 = vadd.f32 %v533, %v851
          %853 = vmatmul.f32.gmra.mxu0 %v832
          %v854 = vpop.f32.mrf.mxu0
          %v855 = vadd.f32 %v533, %v854
          %856 = vdwg.mxu0
          %s857 = scalar_lea.vmem [#allocation2], 272
          %858 = vst.msk [vmem:[%s857] sm:$0xff] %vm746, %v852
          %859 = vst.msk [vmem:[%s857 + $0x8] sm:$0xff] %vm746, %v855
        $region80: #{ffn_block2_forward.1} parent=55 // pred_fallthru
          _
        // Predicated region
        $region81: #{ffn_block2_forward.1} parent=55 // pred_check
          %p860 = pneg %p779
        $region82: #{ffn_block2_forward.1} parent=55 // pred_check_branch
          %862 = sbr.rel (%p860) target = $region84
        $region83: #{ffn_block2_forward.1} parent=55 // pred_region
          %s863 = scalar_lea.vmem [#allocation2], 272
          %864 = vst.msk [vmem:[%s863] sm:$0xff] %vm746, 0.0
          %865 = vst.msk [vmem:[%s863 + $0x8] sm:$0xff] %vm746, 0.0
        $region84: #{ffn_block2_forward.1} parent=55 // pred_fallthru
          _
        %v866 = vld [vmem:[%s5] sm:$0x7]
        %v867 = vld [vmem:[%s5 + $0x4] sm:$0x7]
        %v868 = vld [vmem:[%s5 + $0x8] sm:$0x7]
        %v869 = vperm.slane %v867, 1
        %v870 = vmul.f32 %v650, %v869
        %v871 = vmul.f32 %v653, %v869
        %v872 = vmul.f32 %v656, %v869
        %v873 = vmul.f32 %v659, %v869
        %v874 = vmul.f32 %v662, %v869
        %v875 = vmul.f32 %v665, %v869
        %v876 = vmul.f32 %v668, %v869
        %v877 = vmul.f32 %v671, %v869
        %v878 = vmul.f32 %v674, %v869
        %v879 = vmul.f32 %v677, %v869
        %v880 = vmul.f32 %v680, %v869
        %v881 = vmul.f32 %v683, %v869
        %v882 = vmul.f32 %v686, %v869
        %v883 = vmul.f32 %v689, %v869
        %v884 = vmul.f32 %v692, %v869
        %v885 = vmul.f32 %v695, %v869
        %v886 = vmul.f32 %v698, %v869
        %v887 = vmul.f32 %v701, %v869
        %v888 = vmul.f32 %v704, %v869
        %v889 = vmul.f32 %v707, %v869
        %v890 = vmul.f32 %v710, %v869
        %v891 = vmul.f32 %v713, %v869
        %v892 = vmul.f32 %v716, %v869
        %v893 = vmul.f32 %v719, %v869
        %v894 = vmul.f32 %v722, %v869
        %v895 = vmul.f32 %v725, %v869
        %v896 = vmul.f32 %v728, %v869
        %v897 = vmul.f32 %v731, %v869
        %v898 = vmul.f32 %v734, %v869
        %v899 = vmul.f32 %v737, %v869
        %v900 = vmul.f32 %v740, %v869
        %v901 = vmul.f32 %v743, %v869
        %v902 = vperm.slane %v867, 0
        %v903 = vmul.f32 %v650, %v902
        %v904 = vmul.f32 %v653, %v902
        %v905 = vmul.f32 %v656, %v902
        %v906 = vmul.f32 %v659, %v902
        %v907 = vmul.f32 %v662, %v902
        %v908 = vmul.f32 %v665, %v902
        %v909 = vmul.f32 %v668, %v902
        %v910 = vmul.f32 %v671, %v902
        %v911 = vmul.f32 %v674, %v902
        %v912 = vmul.f32 %v677, %v902
        %v913 = vmul.f32 %v680, %v902
        %v914 = vmul.f32 %v683, %v902
        %v915 = vmul.f32 %v686, %v902
        %v916 = vmul.f32 %v689, %v902
        %v917 = vmul.f32 %v692, %v902
        %v918 = vmul.f32 %v695, %v902
        %v919 = vmul.f32 %v698, %v902
        %v920 = vmul.f32 %v701, %v902
        %v921 = vmul.f32 %v704, %v902
        %v922 = vmul.f32 %v707, %v902
        %v923 = vmul.f32 %v710, %v902
        %v924 = vmul.f32 %v713, %v902
        %v925 = vmul.f32 %v716, %v902
        %v926 = vmul.f32 %v719, %v902
        %v927 = vmul.f32 %v722, %v902
        %v928 = vmul.f32 %v725, %v902
        %v929 = vmul.f32 %v728, %v902
        %v930 = vmul.f32 %v731, %v902
        %v931 = vmul.f32 %v734, %v902
        %v932 = vmul.f32 %v737, %v902
        %v933 = vmul.f32 %v740, %v902
        %v934 = vmul.f32 %v743, %v902
        %v935 = vperm.slane %v867, 2
        %v936 = vmul.f32 %v650, %v935
        %v937 = vmul.f32 %v653, %v935
        %v938 = vmul.f32 %v656, %v935
        %v939 = vmul.f32 %v659, %v935
        %v940 = vmul.f32 %v662, %v935
        %v941 = vmul.f32 %v665, %v935
        %v942 = vmul.f32 %v668, %v935
        %v943 = vmul.f32 %v671, %v935
        %v944 = vmul.f32 %v674, %v935
        %v945 = vmul.f32 %v677, %v935
        %v946 = vmul.f32 %v680, %v935
        %v947 = vmul.f32 %v683, %v935
        %v948 = vmul.f32 %v686, %v935
        %v949 = vmul.f32 %v689, %v935
        %v950 = vmul.f32 %v692, %v935
        %v951 = vmul.f32 %v695, %v935
        %v952 = vmul.f32 %v698, %v935
        %v953 = vmul.f32 %v701, %v935
        %v954 = vmul.f32 %v704, %v935
        %v955 = vmul.f32 %v707, %v935
        %v956 = vmul.f32 %v710, %v935
        %v957 = vmul.f32 %v713, %v935
        %v958 = vmul.f32 %v716, %v935
        %v959 = vmul.f32 %v719, %v935
        %v960 = vmul.f32 %v722, %v935
        %v961 = vmul.f32 %v725, %v935
        %v962 = vmul.f32 %v728, %v935
        %v963 = vmul.f32 %v731, %v935
        %v964 = vmul.f32 %v734, %v935
        %v965 = vmul.f32 %v737, %v935
        %v966 = vmul.f32 %v740, %v935
        %v967 = vmul.f32 %v743, %v935
        %v968 = vld [vmem:[#allocation2] sm:$0xff]
        %v969 = vld [vmem:[#allocation2 + $0x8] sm:$0xff]
        %v970 = vld [vmem:[#allocation2 + $0x10] sm:$0xff]
        %v971 = vld [vmem:[#allocation2 + $0x18] sm:$0xff]
        %v972 = vld [vmem:[#allocation2 + $0x20] sm:$0xff]
        %v973 = vld [vmem:[#allocation2 + $0x28] sm:$0xff]
        %v974 = vld [vmem:[#allocation2 + $0x30] sm:$0xff]
        %v975 = vld [vmem:[#allocation2 + $0x38] sm:$0xff]
        %v976 = vld [vmem:[#allocation2 + $0x40] sm:$0xff]
        %v977 = vld [vmem:[#allocation2 + $0x48] sm:$0xff]
        %v978 = vld [vmem:[#allocation2 + $0x50] sm:$0xff]
        %v979 = vld [vmem:[#allocation2 + $0x58] sm:$0xff]
        %v980 = vld [vmem:[#allocation2 + $0x60] sm:$0xff]
        %v981 = vld [vmem:[#allocation2 + $0x68] sm:$0xff]
        %v982 = vld [vmem:[#allocation2 + $0x70] sm:$0xff]
        %v983 = vld [vmem:[#allocation2 + $0x78] sm:$0xff]
        %v984 = vld [vmem:[#allocation2 + $0x80] sm:$0xff]
        %v985 = vld [vmem:[#allocation2 + $0x88] sm:$0xff]
        %v986 = vld [vmem:[#allocation2 + $0x90] sm:$0xff]
        %v987 = vld [vmem:[#allocation2 + $0x98] sm:$0xff]
        %v988 = vld [vmem:[#allocation2 + $0xa0] sm:$0xff]
        %v989 = vld [vmem:[#allocation2 + $0xa8] sm:$0xff]
        %v990 = vld [vmem:[#allocation2 + $0xb0] sm:$0xff]
        %v991 = vld [vmem:[#allocation2 + $0xb8] sm:$0xff]
        %v992 = vld [vmem:[#allocation2 + $0xc0] sm:$0xff]
        %v993 = vld [vmem:[#allocation2 + $0xc8] sm:$0xff]
        %v994 = vld [vmem:[#allocation2 + $0xd0] sm:$0xff]
        %v995 = vld [vmem:[#allocation2 + $0xd8] sm:$0xff]
        %v996 = vld [vmem:[#allocation2 + $0xe0] sm:$0xff]
        %v997 = vld [vmem:[#allocation2 + $0xe8] sm:$0xff]
        %v998 = vld [vmem:[#allocation2 + $0xf0] sm:$0xff]
        %v999 = vld [vmem:[#allocation2 + $0xf8] sm:$0xff]
        %v1000 = vperm.slane %v866, 1
        %v1001 = vmul.f32 %v968, %v1000
        %v1002 = vmul.f32 %v969, %v1000
        %v1003 = vmul.f32 %v970, %v1000
        %v1004 = vmul.f32 %v971, %v1000
        %v1005 = vmul.f32 %v972, %v1000
        %v1006 = vmul.f32 %v973, %v1000
        %v1007 = vmul.f32 %v974, %v1000
        %v1008 = vmul.f32 %v975, %v1000
        %v1009 = vmul.f32 %v976, %v1000
        %v1010 = vmul.f32 %v977, %v1000
        %v1011 = vmul.f32 %v978, %v1000
        %v1012 = vmul.f32 %v979, %v1000
        %v1013 = vmul.f32 %v980, %v1000
        %v1014 = vmul.f32 %v981, %v1000
        %v1015 = vmul.f32 %v982, %v1000
        %v1016 = vmul.f32 %v983, %v1000
        %v1017 = vmul.f32 %v984, %v1000
        %v1018 = vmul.f32 %v985, %v1000
        %v1019 = vmul.f32 %v986, %v1000
        %v1020 = vmul.f32 %v987, %v1000
        %v1021 = vmul.f32 %v988, %v1000
        %v1022 = vmul.f32 %v989, %v1000
        %v1023 = vmul.f32 %v990, %v1000
        %v1024 = vmul.f32 %v991, %v1000
        %v1025 = vmul.f32 %v992, %v1000
        %v1026 = vmul.f32 %v993, %v1000
        %v1027 = vmul.f32 %v994, %v1000
        %v1028 = vmul.f32 %v995, %v1000
        %v1029 = vmul.f32 %v996, %v1000
        %v1030 = vmul.f32 %v997, %v1000
        %v1031 = vmul.f32 %v998, %v1000
        %v1032 = vmul.f32 %v999, %v1000
        %v1033 = vadd.f32 %v870, %v1001
        %v1034 = vadd.f32 %v871, %v1002
        %v1035 = vadd.f32 %v872, %v1003
        %v1036 = vadd.f32 %v873, %v1004
        %v1037 = vadd.f32 %v874, %v1005
        %v1038 = vadd.f32 %v875, %v1006
        %v1039 = vadd.f32 %v876, %v1007
        %v1040 = vadd.f32 %v877, %v1008
        %v1041 = vadd.f32 %v878, %v1009
        %v1042 = vadd.f32 %v879, %v1010
        %v1043 = vadd.f32 %v880, %v1011
        %v1044 = vadd.f32 %v881, %v1012
        %v1045 = vadd.f32 %v882, %v1013
        %v1046 = vadd.f32 %v883, %v1014
        %v1047 = vadd.f32 %v884, %v1015
        %v1048 = vadd.f32 %v885, %v1016
        %v1049 = vadd.f32 %v886, %v1017
        %v1050 = vadd.f32 %v887, %v1018
        %v1051 = vadd.f32 %v888, %v1019
        %v1052 = vadd.f32 %v889, %v1020
        %v1053 = vadd.f32 %v890, %v1021
        %v1054 = vadd.f32 %v891, %v1022
        %v1055 = vadd.f32 %v892, %v1023
        %v1056 = vadd.f32 %v893, %v1024
        %v1057 = vadd.f32 %v894, %v1025
        %v1058 = vadd.f32 %v895, %v1026
        %v1059 = vadd.f32 %v896, %v1027
        %v1060 = vadd.f32 %v897, %v1028
        %v1061 = vadd.f32 %v898, %v1029
        %v1062 = vadd.f32 %v899, %v1030
        %v1063 = vadd.f32 %v900, %v1031
        %v1064 = vadd.f32 %v901, %v1032
        %v1065 = vperm.slane %v866, 0
        %v1066 = vmul.f32 %v968, %v1065
        %v1067 = vmul.f32 %v969, %v1065
        %v1068 = vmul.f32 %v970, %v1065
        %v1069 = vmul.f32 %v971, %v1065
        %v1070 = vmul.f32 %v972, %v1065
        %v1071 = vmul.f32 %v973, %v1065
        %v1072 = vmul.f32 %v974, %v1065
        %v1073 = vmul.f32 %v975, %v1065
        %v1074 = vmul.f32 %v976, %v1065
        %v1075 = vmul.f32 %v977, %v1065
        %v1076 = vmul.f32 %v978, %v1065
        %v1077 = vmul.f32 %v979, %v1065
        %v1078 = vmul.f32 %v980, %v1065
        %v1079 = vmul.f32 %v981, %v1065
        %v1080 = vmul.f32 %v982, %v1065
        %v1081 = vmul.f32 %v983, %v1065
        %v1082 = vmul.f32 %v984, %v1065
        %v1083 = vmul.f32 %v985, %v1065
        %v1084 = vmul.f32 %v986, %v1065
        %v1085 = vmul.f32 %v987, %v1065
        %v1086 = vmul.f32 %v988, %v1065
        %v1087 = vmul.f32 %v989, %v1065
        %v1088 = vmul.f32 %v990, %v1065
        %v1089 = vmul.f32 %v991, %v1065
        %v1090 = vmul.f32 %v992, %v1065
        %v1091 = vmul.f32 %v993, %v1065
        %v1092 = vmul.f32 %v994, %v1065
        %v1093 = vmul.f32 %v995, %v1065
        %v1094 = vmul.f32 %v996, %v1065
        %v1095 = vmul.f32 %v997, %v1065
        %v1096 = vmul.f32 %v998, %v1065
        %v1097 = vmul.f32 %v999, %v1065
        %v1098 = vadd.f32 %v903, %v1066
        %v1099 = vadd.f32 %v904, %v1067
        %v1100 = vadd.f32 %v905, %v1068
        %v1101 = vadd.f32 %v906, %v1069
        %v1102 = vadd.f32 %v907, %v1070
        %v1103 = vadd.f32 %v908, %v1071
        %v1104 = vadd.f32 %v909, %v1072
        %v1105 = vadd.f32 %v910, %v1073
        %v1106 = vadd.f32 %v911, %v1074
        %v1107 = vadd.f32 %v912, %v1075
        %v1108 = vadd.f32 %v913, %v1076
        %v1109 = vadd.f32 %v914, %v1077
        %v1110 = vadd.f32 %v915, %v1078
        %v1111 = vadd.f32 %v916, %v1079
        %v1112 = vadd.f32 %v917, %v1080
        %v1113 = vadd.f32 %v918, %v1081
        %v1114 = vadd.f32 %v919, %v1082
        %v1115 = vadd.f32 %v920, %v1083
        %v1116 = vadd.f32 %v921, %v1084
        %v1117 = vadd.f32 %v922, %v1085
        %v1118 = vadd.f32 %v923, %v1086
        %v1119 = vadd.f32 %v924, %v1087
        %v1120 = vadd.f32 %v925, %v1088
        %v1121 = vadd.f32 %v926, %v1089
        %v1122 = vadd.f32 %v927, %v1090
        %v1123 = vadd.f32 %v928, %v1091
        %v1124 = vadd.f32 %v929, %v1092
        %v1125 = vadd.f32 %v930, %v1093
        %v1126 = vadd.f32 %v931, %v1094
        %v1127 = vadd.f32 %v932, %v1095
        %v1128 = vadd.f32 %v933, %v1096
        %v1129 = vadd.f32 %v934, %v1097
        %v1130 = vperm.slane %v866, 2
        %v1131 = vmul.f32 %v968, %v1130
        %v1132 = vmul.f32 %v969, %v1130
        %v1133 = vmul.f32 %v970, %v1130
        %v1134 = vmul.f32 %v971, %v1130
        %v1135 = vmul.f32 %v972, %v1130
        %v1136 = vmul.f32 %v973, %v1130
        %v1137 = vmul.f32 %v974, %v1130
        %v1138 = vmul.f32 %v975, %v1130
        %v1139 = vmul.f32 %v976, %v1130
        %v1140 = vmul.f32 %v977, %v1130
        %v1141 = vmul.f32 %v978, %v1130
        %v1142 = vmul.f32 %v979, %v1130
        %v1143 = vmul.f32 %v980, %v1130
        %v1144 = vmul.f32 %v981, %v1130
        %v1145 = vmul.f32 %v982, %v1130
        %v1146 = vmul.f32 %v983, %v1130
        %v1147 = vmul.f32 %v984, %v1130
        %v1148 = vmul.f32 %v985, %v1130
        %v1149 = vmul.f32 %v986, %v1130
        %v1150 = vmul.f32 %v987, %v1130
        %v1151 = vmul.f32 %v988, %v1130
        %v1152 = vmul.f32 %v989, %v1130
        %v1153 = vmul.f32 %v990, %v1130
        %v1154 = vmul.f32 %v991, %v1130
        %v1155 = vmul.f32 %v992, %v1130
        %v1156 = vmul.f32 %v993, %v1130
        %v1157 = vmul.f32 %v994, %v1130
        %v1158 = vmul.f32 %v995, %v1130
        %v1159 = vmul.f32 %v996, %v1130
        %v1160 = vmul.f32 %v997, %v1130
        %v1161 = vmul.f32 %v998, %v1130
        %v1162 = vmul.f32 %v999, %v1130
        %v1163 = vadd.f32 %v936, %v1131
        %v1164 = vadd.f32 %v937, %v1132
        %v1165 = vadd.f32 %v938, %v1133
        %v1166 = vadd.f32 %v939, %v1134
        %v1167 = vadd.f32 %v940, %v1135
        %v1168 = vadd.f32 %v941, %v1136
        %v1169 = vadd.f32 %v942, %v1137
        %v1170 = vadd.f32 %v943, %v1138
        %v1171 = vadd.f32 %v944, %v1139
        %v1172 = vadd.f32 %v945, %v1140
        %v1173 = vadd.f32 %v946, %v1141
        %v1174 = vadd.f32 %v947, %v1142
        %v1175 = vadd.f32 %v948, %v1143
        %v1176 = vadd.f32 %v949, %v1144
        %v1177 = vadd.f32 %v950, %v1145
        %v1178 = vadd.f32 %v951, %v1146
        %v1179 = vadd.f32 %v952, %v1147
        %v1180 = vadd.f32 %v953, %v1148
        %v1181 = vadd.f32 %v954, %v1149
        %v1182 = vadd.f32 %v955, %v1150
        %v1183 = vadd.f32 %v956, %v1151
        %v1184 = vadd.f32 %v957, %v1152
        %v1185 = vadd.f32 %v958, %v1153
        %v1186 = vadd.f32 %v959, %v1154
        %v1187 = vadd.f32 %v960, %v1155
        %v1188 = vadd.f32 %v961, %v1156
        %v1189 = vadd.f32 %v962, %v1157
        %v1190 = vadd.f32 %v963, %v1158
        %v1191 = vadd.f32 %v964, %v1159
        %v1192 = vadd.f32 %v965, %v1160
        %v1193 = vadd.f32 %v966, %v1161
        %v1194 = vadd.f32 %v967, %v1162
        %s1195 = scalar_lea.vmem [#allocation2], 32
        %v1196 = vld [vmem:[%s1195] sm:$0xff]
        %v1197 = vld [vmem:[%s1195 + $0x8] sm:$0xff]
        %v1198 = vld [vmem:[%s1195 + $0x10] sm:$0xff]
        %v1199 = vld [vmem:[%s1195 + $0x18] sm:$0xff]
        %v1200 = vld [vmem:[%s1195 + $0x20] sm:$0xff]
        %v1201 = vld [vmem:[%s1195 + $0x28] sm:$0xff]
        %v1202 = vld [vmem:[%s1195 + $0x30] sm:$0xff]
        %v1203 = vld [vmem:[%s1195 + $0x38] sm:$0xff]
        %v1204 = vld [vmem:[%s1195 + $0x40] sm:$0xff]
        %v1205 = vld [vmem:[%s1195 + $0x48] sm:$0xff]
        %v1206 = vld [vmem:[%s1195 + $0x50] sm:$0xff]
        %v1207 = vld [vmem:[%s1195 + $0x58] sm:$0xff]
        %v1208 = vld [vmem:[%s1195 + $0x60] sm:$0xff]
        %v1209 = vld [vmem:[%s1195 + $0x68] sm:$0xff]
        %v1210 = vld [vmem:[%s1195 + $0x70] sm:$0xff]
        %v1211 = vld [vmem:[%s1195 + $0x78] sm:$0xff]
        %v1212 = vld [vmem:[%s1195 + $0x80] sm:$0xff]
        %v1213 = vld [vmem:[%s1195 + $0x88] sm:$0xff]
        %v1214 = vld [vmem:[%s1195 + $0x90] sm:$0xff]
        %v1215 = vld [vmem:[%s1195 + $0x98] sm:$0xff]
        %v1216 = vld [vmem:[%s1195 + $0xa0] sm:$0xff]
        %v1217 = vld [vmem:[%s1195 + $0xa8] sm:$0xff]
        %v1218 = vld [vmem:[%s1195 + $0xb0] sm:$0xff]
        %v1219 = vld [vmem:[%s1195 + $0xb8] sm:$0xff]
        %v1220 = vld [vmem:[%s1195 + $0xc0] sm:$0xff]
        %v1221 = vld [vmem:[%s1195 + $0xc8] sm:$0xff]
        %v1222 = vld [vmem:[%s1195 + $0xd0] sm:$0xff]
        %v1223 = vld [vmem:[%s1195 + $0xd8] sm:$0xff]
        %v1224 = vld [vmem:[%s1195 + $0xe0] sm:$0xff]
        %v1225 = vld [vmem:[%s1195 + $0xe8] sm:$0xff]
        %v1226 = vld [vmem:[%s1195 + $0xf0] sm:$0xff]
        %v1227 = vld [vmem:[%s1195 + $0xf8] sm:$0xff]
        %v1228 = vperm.slane %v868, 1
        %v1229 = vmul.f32 %v1196, %v1228
        %v1230 = vmul.f32 %v1197, %v1228
        %v1231 = vmul.f32 %v1198, %v1228
        %v1232 = vmul.f32 %v1199, %v1228
        %v1233 = vmul.f32 %v1200, %v1228
        %v1234 = vmul.f32 %v1201, %v1228
        %v1235 = vmul.f32 %v1202, %v1228
        %v1236 = vmul.f32 %v1203, %v1228
        %v1237 = vmul.f32 %v1204, %v1228
        %v1238 = vmul.f32 %v1205, %v1228
        %v1239 = vmul.f32 %v1206, %v1228
        %v1240 = vmul.f32 %v1207, %v1228
        %v1241 = vmul.f32 %v1208, %v1228
        %v1242 = vmul.f32 %v1209, %v1228
        %v1243 = vmul.f32 %v1210, %v1228
        %v1244 = vmul.f32 %v1211, %v1228
        %v1245 = vmul.f32 %v1212, %v1228
        %v1246 = vmul.f32 %v1213, %v1228
        %v1247 = vmul.f32 %v1214, %v1228
        %v1248 = vmul.f32 %v1215, %v1228
        %v1249 = vmul.f32 %v1216, %v1228
        %v1250 = vmul.f32 %v1217, %v1228
        %v1251 = vmul.f32 %v1218, %v1228
        %v1252 = vmul.f32 %v1219, %v1228
        %v1253 = vmul.f32 %v1220, %v1228
        %v1254 = vmul.f32 %v1221, %v1228
        %v1255 = vmul.f32 %v1222, %v1228
        %v1256 = vmul.f32 %v1223, %v1228
        %v1257 = vmul.f32 %v1224, %v1228
        %v1258 = vmul.f32 %v1225, %v1228
        %v1259 = vmul.f32 %v1226, %v1228
        %v1260 = vmul.f32 %v1227, %v1228
        %v1261 = vadd.f32 %v1033, %v1229
        %v1262 = vadd.f32 %v1034, %v1230
        %v1263 = vadd.f32 %v1035, %v1231
        %v1264 = vadd.f32 %v1036, %v1232
        %v1265 = vadd.f32 %v1037, %v1233
        %v1266 = vadd.f32 %v1038, %v1234
        %v1267 = vadd.f32 %v1039, %v1235
        %v1268 = vadd.f32 %v1040, %v1236
        %v1269 = vadd.f32 %v1041, %v1237
        %v1270 = vadd.f32 %v1042, %v1238
        %v1271 = vadd.f32 %v1043, %v1239
        %v1272 = vadd.f32 %v1044, %v1240
        %v1273 = vadd.f32 %v1045, %v1241
        %v1274 = vadd.f32 %v1046, %v1242
        %v1275 = vadd.f32 %v1047, %v1243
        %v1276 = vadd.f32 %v1048, %v1244
        %v1277 = vadd.f32 %v1049, %v1245
        %v1278 = vadd.f32 %v1050, %v1246
        %v1279 = vadd.f32 %v1051, %v1247
        %v1280 = vadd.f32 %v1052, %v1248
        %v1281 = vadd.f32 %v1053, %v1249
        %v1282 = vadd.f32 %v1054, %v1250
        %v1283 = vadd.f32 %v1055, %v1251
        %v1284 = vadd.f32 %v1056, %v1252
        %v1285 = vadd.f32 %v1057, %v1253
        %v1286 = vadd.f32 %v1058, %v1254
        %v1287 = vadd.f32 %v1059, %v1255
        %v1288 = vadd.f32 %v1060, %v1256
        %v1289 = vadd.f32 %v1061, %v1257
        %v1290 = vadd.f32 %v1062, %v1258
        %v1291 = vadd.f32 %v1063, %v1259
        %v1292 = vadd.f32 %v1064, %v1260
        %v1293 = vperm.slane %v868, 0
        %v1294 = vmul.f32 %v1196, %v1293
        %v1295 = vmul.f32 %v1197, %v1293
        %v1296 = vmul.f32 %v1198, %v1293
        %v1297 = vmul.f32 %v1199, %v1293
        %v1298 = vmul.f32 %v1200, %v1293
        %v1299 = vmul.f32 %v1201, %v1293
        %v1300 = vmul.f32 %v1202, %v1293
        %v1301 = vmul.f32 %v1203, %v1293
        %v1302 = vmul.f32 %v1204, %v1293
        %v1303 = vmul.f32 %v1205, %v1293
        %v1304 = vmul.f32 %v1206, %v1293
        %v1305 = vmul.f32 %v1207, %v1293
        %v1306 = vmul.f32 %v1208, %v1293
        %v1307 = vmul.f32 %v1209, %v1293
        %v1308 = vmul.f32 %v1210, %v1293
        %v1309 = vmul.f32 %v1211, %v1293
        %v1310 = vmul.f32 %v1212, %v1293
        %v1311 = vmul.f32 %v1213, %v1293
        %v1312 = vmul.f32 %v1214, %v1293
        %v1313 = vmul.f32 %v1215, %v1293
        %v1314 = vmul.f32 %v1216, %v1293
        %v1315 = vmul.f32 %v1217, %v1293
        %v1316 = vmul.f32 %v1218, %v1293
        %v1317 = vmul.f32 %v1219, %v1293
        %v1318 = vmul.f32 %v1220, %v1293
        %v1319 = vmul.f32 %v1221, %v1293
        %v1320 = vmul.f32 %v1222, %v1293
        %v1321 = vmul.f32 %v1223, %v1293
        %v1322 = vmul.f32 %v1224, %v1293
        %v1323 = vmul.f32 %v1225, %v1293
        %v1324 = vmul.f32 %v1226, %v1293
        %v1325 = vmul.f32 %v1227, %v1293
        %v1326 = vadd.f32 %v1098, %v1294
        %v1327 = vadd.f32 %v1099, %v1295
        %v1328 = vadd.f32 %v1100, %v1296
        %v1329 = vadd.f32 %v1101, %v1297
        %v1330 = vadd.f32 %v1102, %v1298
        %v1331 = vadd.f32 %v1103, %v1299
        %v1332 = vadd.f32 %v1104, %v1300
        %v1333 = vadd.f32 %v1105, %v1301
        %v1334 = vadd.f32 %v1106, %v1302
        %v1335 = vadd.f32 %v1107, %v1303
        %v1336 = vadd.f32 %v1108, %v1304
        %v1337 = vadd.f32 %v1109, %v1305
        %v1338 = vadd.f32 %v1110, %v1306
        %v1339 = vadd.f32 %v1111, %v1307
        %v1340 = vadd.f32 %v1112, %v1308
        %v1341 = vadd.f32 %v1113, %v1309
        %v1342 = vadd.f32 %v1114, %v1310
        %v1343 = vadd.f32 %v1115, %v1311
        %v1344 = vadd.f32 %v1116, %v1312
        %v1345 = vadd.f32 %v1117, %v1313
        %v1346 = vadd.f32 %v1118, %v1314
        %v1347 = vadd.f32 %v1119, %v1315
        %v1348 = vadd.f32 %v1120, %v1316
        %v1349 = vadd.f32 %v1121, %v1317
        %v1350 = vadd.f32 %v1122, %v1318
        %v1351 = vadd.f32 %v1123, %v1319
        %v1352 = vadd.f32 %v1124, %v1320
        %v1353 = vadd.f32 %v1125, %v1321
        %v1354 = vadd.f32 %v1126, %v1322
        %v1355 = vadd.f32 %v1127, %v1323
        %v1356 = vadd.f32 %v1128, %v1324
        %v1357 = vadd.f32 %v1129, %v1325
        %v1358 = vperm.slane %v868, 2
        %v1359 = vmul.f32 %v1196, %v1358
        %v1360 = vmul.f32 %v1197, %v1358
        %v1361 = vmul.f32 %v1198, %v1358
        %v1362 = vmul.f32 %v1199, %v1358
        %v1363 = vmul.f32 %v1200, %v1358
        %v1364 = vmul.f32 %v1201, %v1358
        %v1365 = vmul.f32 %v1202, %v1358
        %v1366 = vmul.f32 %v1203, %v1358
        %v1367 = vmul.f32 %v1204, %v1358
        %v1368 = vmul.f32 %v1205, %v1358
        %v1369 = vmul.f32 %v1206, %v1358
        %v1370 = vmul.f32 %v1207, %v1358
        %v1371 = vmul.f32 %v1208, %v1358
        %v1372 = vmul.f32 %v1209, %v1358
        %v1373 = vmul.f32 %v1210, %v1358
        %v1374 = vmul.f32 %v1211, %v1358
        %v1375 = vmul.f32 %v1212, %v1358
        %v1376 = vmul.f32 %v1213, %v1358
        %v1377 = vmul.f32 %v1214, %v1358
        %v1378 = vmul.f32 %v1215, %v1358
        %v1379 = vmul.f32 %v1216, %v1358
        %v1380 = vmul.f32 %v1217, %v1358
        %v1381 = vmul.f32 %v1218, %v1358
        %v1382 = vmul.f32 %v1219, %v1358
        %v1383 = vmul.f32 %v1220, %v1358
        %v1384 = vmul.f32 %v1221, %v1358
        %v1385 = vmul.f32 %v1222, %v1358
        %v1386 = vmul.f32 %v1223, %v1358
        %v1387 = vmul.f32 %v1224, %v1358
        %v1388 = vmul.f32 %v1225, %v1358
        %v1389 = vmul.f32 %v1226, %v1358
        %v1390 = vmul.f32 %v1227, %v1358
        %v1391 = vadd.f32 %v1163, %v1359
        %v1392 = vadd.f32 %v1164, %v1360
        %v1393 = vadd.f32 %v1165, %v1361
        %v1394 = vadd.f32 %v1166, %v1362
        %v1395 = vadd.f32 %v1167, %v1363
        %v1396 = vadd.f32 %v1168, %v1364
        %v1397 = vadd.f32 %v1169, %v1365
        %v1398 = vadd.f32 %v1170, %v1366
        %v1399 = vadd.f32 %v1171, %v1367
        %v1400 = vadd.f32 %v1172, %v1368
        %v1401 = vadd.f32 %v1173, %v1369
        %v1402 = vadd.f32 %v1174, %v1370
        %v1403 = vadd.f32 %v1175, %v1371
        %v1404 = vadd.f32 %v1176, %v1372
        %v1405 = vadd.f32 %v1177, %v1373
        %v1406 = vadd.f32 %v1178, %v1374
        %v1407 = vadd.f32 %v1179, %v1375
        %v1408 = vadd.f32 %v1180, %v1376
        %v1409 = vadd.f32 %v1181, %v1377
        %v1410 = vadd.f32 %v1182, %v1378
        %v1411 = vadd.f32 %v1183, %v1379
        %v1412 = vadd.f32 %v1184, %v1380
        %v1413 = vadd.f32 %v1185, %v1381
        %v1414 = vadd.f32 %v1186, %v1382
        %v1415 = vadd.f32 %v1187, %v1383
        %v1416 = vadd.f32 %v1188, %v1384
        %v1417 = vadd.f32 %v1189, %v1385
        %v1418 = vadd.f32 %v1190, %v1386
        %v1419 = vadd.f32 %v1191, %v1387
        %v1420 = vadd.f32 %v1192, %v1388
        %v1421 = vadd.f32 %v1193, %v1389
        %v1422 = vadd.f32 %v1194, %v1390
        %v1423 = vrot.slane %v1326, 7
        %v1424 = vrot.slane %v1327, 7
        %v1425 = vrot.slane %v1328, 7
        %v1426 = vrot.slane %v1329, 7
        %v1427 = vrot.slane %v1330, 7
        %v1428 = vrot.slane %v1331, 7
        %v1429 = vrot.slane %v1332, 7
        %v1430 = vrot.slane %v1333, 7
        %v1431 = vrot.slane %v1334, 7
        %v1432 = vrot.slane %v1335, 7
        %v1433 = vrot.slane %v1336, 7
        %v1434 = vrot.slane %v1337, 7
        %v1435 = vrot.slane %v1338, 7
        %v1436 = vrot.slane %v1339, 7
        %v1437 = vrot.slane %v1340, 7
        %v1438 = vrot.slane %v1341, 7
        %v1439 = vrot.slane %v1342, 7
        %v1440 = vrot.slane %v1343, 7
        %v1441 = vrot.slane %v1344, 7
        %v1442 = vrot.slane %v1345, 7
        %v1443 = vrot.slane %v1346, 7
        %v1444 = vrot.slane %v1347, 7
        %v1445 = vrot.slane %v1348, 7
        %v1446 = vrot.slane %v1349, 7
        %v1447 = vrot.slane %v1350, 7
        %v1448 = vrot.slane %v1351, 7
        %v1449 = vrot.slane %v1352, 7
        %v1450 = vrot.slane %v1353, 7
        %v1451 = vrot.slane %v1354, 7
        %v1452 = vrot.slane %v1355, 7
        %v1453 = vrot.slane %v1356, 7
        %v1454 = vrot.slane %v1357, 7
        %v1455 = vlaneseq
        %v1456 = vshrl.u32 %v1455, 7
        %vm1457 = vcmp.lt.s32.totalorder %v1456, 1
        %v1458 = vsel %vm1457, %v1453, %v1454
        %v1459 = vsel %vm1457, %v1452, %v1453
        %v1460 = vsel %vm1457, %v1451, %v1452
        %v1461 = vsel %vm1457, %v1450, %v1451
        %v1462 = vsel %vm1457, %v1449, %v1450
        %v1463 = vsel %vm1457, %v1448, %v1449
        %v1464 = vsel %vm1457, %v1447, %v1448
        %v1465 = vsel %vm1457, %v1446, %v1447
        %v1466 = vsel %vm1457, %v1445, %v1446
        %v1467 = vsel %vm1457, %v1444, %v1445
        %v1468 = vsel %vm1457, %v1443, %v1444
        %v1469 = vsel %vm1457, %v1442, %v1443
        %v1470 = vsel %vm1457, %v1441, %v1442
        %v1471 = vsel %vm1457, %v1440, %v1441
        %v1472 = vsel %vm1457, %v1439, %v1440
        %v1473 = vsel %vm1457, %v1438, %v1439
        %v1474 = vsel %vm1457, %v1437, %v1438
        %v1475 = vsel %vm1457, %v1436, %v1437
        %v1476 = vsel %vm1457, %v1435, %v1436
        %v1477 = vsel %vm1457, %v1434, %v1435
        %v1478 = vsel %vm1457, %v1433, %v1434
        %v1479 = vsel %vm1457, %v1432, %v1433
        %v1480 = vsel %vm1457, %v1431, %v1432
        %v1481 = vsel %vm1457, %v1430, %v1431
        %v1482 = vsel %vm1457, %v1429, %v1430
        %v1483 = vsel %vm1457, %v1428, %v1429
        %v1484 = vsel %vm1457, %v1427, %v1428
        %v1485 = vsel %vm1457, %v1426, %v1427
        %v1486 = vsel %vm1457, %v1425, %v1426
        %v1487 = vsel %vm1457, %v1424, %v1425
        %v1488 = vsel %vm1457, %v1423, %v1424
        %v1489 = vsel %vm1457, %v1454, %v1423
        %v1490 = vrot.slane %v1391, 1
        %v1491 = vrot.slane %v1392, 1
        %v1492 = vrot.slane %v1393, 1
        %v1493 = vrot.slane %v1394, 1
        %v1494 = vrot.slane %v1395, 1
        %v1495 = vrot.slane %v1396, 1
        %v1496 = vrot.slane %v1397, 1
        %v1497 = vrot.slane %v1398, 1
        %v1498 = vrot.slane %v1399, 1
        %v1499 = vrot.slane %v1400, 1
        %v1500 = vrot.slane %v1401, 1
        %v1501 = vrot.slane %v1402, 1
        %v1502 = vrot.slane %v1403, 1
        %v1503 = vrot.slane %v1404, 1
        %v1504 = vrot.slane %v1405, 1
        %v1505 = vrot.slane %v1406, 1
        %v1506 = vrot.slane %v1407, 1
        %v1507 = vrot.slane %v1408, 1
        %v1508 = vrot.slane %v1409, 1
        %v1509 = vrot.slane %v1410, 1
        %v1510 = vrot.slane %v1411, 1
        %v1511 = vrot.slane %v1412, 1
        %v1512 = vrot.slane %v1413, 1
        %v1513 = vrot.slane %v1414, 1
        %v1514 = vrot.slane %v1415, 1
        %v1515 = vrot.slane %v1416, 1
        %v1516 = vrot.slane %v1417, 1
        %v1517 = vrot.slane %v1418, 1
        %v1518 = vrot.slane %v1419, 1
        %v1519 = vrot.slane %v1420, 1
        %v1520 = vrot.slane %v1421, 1
        %v1521 = vrot.slane %v1422, 1
        %vm1522 = vcmp.lt.s32.totalorder %v1456, 7
        %v1523 = vsel %vm1522, %v1520, %v1521
        %v1524 = vsel %vm1522, %v1519, %v1520
        %v1525 = vsel %vm1522, %v1518, %v1519
        %v1526 = vsel %vm1522, %v1517, %v1518
        %v1527 = vsel %vm1522, %v1516, %v1517
        %v1528 = vsel %vm1522, %v1515, %v1516
        %v1529 = vsel %vm1522, %v1514, %v1515
        %v1530 = vsel %vm1522, %v1513, %v1514
        %v1531 = vsel %vm1522, %v1512, %v1513
        %v1532 = vsel %vm1522, %v1511, %v1512
        %v1533 = vsel %vm1522, %v1510, %v1511
        %v1534 = vsel %vm1522, %v1509, %v1510
        %v1535 = vsel %vm1522, %v1508, %v1509
        %v1536 = vsel %vm1522, %v1507, %v1508
        %v1537 = vsel %vm1522, %v1506, %v1507
        %v1538 = vsel %vm1522, %v1505, %v1506
        %v1539 = vsel %vm1522, %v1504, %v1505
        %v1540 = vsel %vm1522, %v1503, %v1504
        %v1541 = vsel %vm1522, %v1502, %v1503
        %v1542 = vsel %vm1522, %v1501, %v1502
        %v1543 = vsel %vm1522, %v1500, %v1501
        %v1544 = vsel %vm1522, %v1499, %v1500
        %v1545 = vsel %vm1522, %v1498, %v1499
        %v1546 = vsel %vm1522, %v1497, %v1498
        %v1547 = vsel %vm1522, %v1496, %v1497
        %v1548 = vsel %vm1522, %v1495, %v1496
        %v1549 = vsel %vm1522, %v1494, %v1495
        %v1550 = vsel %vm1522, %v1493, %v1494
        %v1551 = vsel %vm1522, %v1492, %v1493
        %v1552 = vsel %vm1522, %v1491, %v1492
        %v1553 = vsel %vm1522, %v1490, %v1491
        %v1554 = vsel %vm1522, %v1521, %v1490
        %v1555 = vadd.s32 %v1456, 8
        %vm1556 = vcmp.ge.s32.totalorder %v1456, 1
        %vm1557 = vcmp.ge.s32.totalorder %v1555, 1
        %v1558 = vsel %vm1556, %v1489, 0.0
        %v1559 = vsel %vm1557, %v1488, 0.0
        %v1560 = vsel %vm1556, %v1487, 0.0
        %v1561 = vsel %vm1557, %v1486, 0.0
        %v1562 = vsel %vm1556, %v1485, 0.0
        %v1563 = vsel %vm1557, %v1484, 0.0
        %v1564 = vsel %vm1556, %v1483, 0.0
        %v1565 = vsel %vm1557, %v1482, 0.0
        %v1566 = vsel %vm1556, %v1481, 0.0
        %v1567 = vsel %vm1557, %v1480, 0.0
        %v1568 = vsel %vm1556, %v1479, 0.0
        %v1569 = vsel %vm1557, %v1478, 0.0
        %v1570 = vsel %vm1556, %v1477, 0.0
        %v1571 = vsel %vm1557, %v1476, 0.0
        %v1572 = vsel %vm1556, %v1475, 0.0
        %v1573 = vsel %vm1557, %v1474, 0.0
        %v1574 = vsel %vm1556, %v1473, 0.0
        %v1575 = vsel %vm1557, %v1472, 0.0
        %v1576 = vsel %vm1556, %v1471, 0.0
        %v1577 = vsel %vm1557, %v1470, 0.0
        %v1578 = vsel %vm1556, %v1469, 0.0
        %v1579 = vsel %vm1557, %v1468, 0.0
        %v1580 = vsel %vm1556, %v1467, 0.0
        %v1581 = vsel %vm1557, %v1466, 0.0
        %v1582 = vsel %vm1556, %v1465, 0.0
        %v1583 = vsel %vm1557, %v1464, 0.0
        %v1584 = vsel %vm1556, %v1463, 0.0
        %v1585 = vsel %vm1557, %v1462, 0.0
        %v1586 = vsel %vm1556, %v1461, 0.0
        %v1587 = vsel %vm1557, %v1460, 0.0
        %v1588 = vsel %vm1556, %v1459, 0.0
        %v1589 = vsel %vm1557, %v1458, 0.0
        %v1590 = vadd.f32 %v1261, %v1558
        %v1591 = vadd.f32 %v1262, %v1559
        %v1592 = vadd.f32 %v1263, %v1560
        %v1593 = vadd.f32 %v1264, %v1561
        %v1594 = vadd.f32 %v1265, %v1562
        %v1595 = vadd.f32 %v1266, %v1563
        %v1596 = vadd.f32 %v1267, %v1564
        %v1597 = vadd.f32 %v1268, %v1565
        %v1598 = vadd.f32 %v1269, %v1566
        %v1599 = vadd.f32 %v1270, %v1567
        %v1600 = vadd.f32 %v1271, %v1568
        %v1601 = vadd.f32 %v1272, %v1569
        %v1602 = vadd.f32 %v1273, %v1570
        %v1603 = vadd.f32 %v1274, %v1571
        %v1604 = vadd.f32 %v1275, %v1572
        %v1605 = vadd.f32 %v1276, %v1573
        %v1606 = vadd.f32 %v1277, %v1574
        %v1607 = vadd.f32 %v1278, %v1575
        %v1608 = vadd.f32 %v1279, %v1576
        %v1609 = vadd.f32 %v1280, %v1577
        %v1610 = vadd.f32 %v1281, %v1578
        %v1611 = vadd.f32 %v1282, %v1579
        %v1612 = vadd.f32 %v1283, %v1580
        %v1613 = vadd.f32 %v1284, %v1581
        %v1614 = vadd.f32 %v1285, %v1582
        %v1615 = vadd.f32 %v1286, %v1583
        %v1616 = vadd.f32 %v1287, %v1584
        %v1617 = vadd.f32 %v1288, %v1585
        %v1618 = vadd.f32 %v1289, %v1586
        %v1619 = vadd.f32 %v1290, %v1587
        %v1620 = vadd.f32 %v1291, %v1588
        %v1621 = vadd.f32 %v1292, %v1589
        %vm1622 = vcmp.le.s32.totalorder %v1456, 14
        %vm1623 = vcmp.le.s32.totalorder %v1555, 14
        %v1624 = vsel %vm1622, %v1553, 0.0
        %v1625 = vsel %vm1623, %v1552, 0.0
        %v1626 = vsel %vm1622, %v1551, 0.0
        %v1627 = vsel %vm1623, %v1550, 0.0
        %v1628 = vsel %vm1622, %v1549, 0.0
        %v1629 = vsel %vm1623, %v1548, 0.0
        %v1630 = vsel %vm1622, %v1547, 0.0
        %v1631 = vsel %vm1623, %v1546, 0.0
        %v1632 = vsel %vm1622, %v1545, 0.0
        %v1633 = vsel %vm1623, %v1544, 0.0
        %v1634 = vsel %vm1622, %v1543, 0.0
        %v1635 = vsel %vm1623, %v1542, 0.0
        %v1636 = vsel %vm1622, %v1541, 0.0
        %v1637 = vsel %vm1623, %v1540, 0.0
        %v1638 = vsel %vm1622, %v1539, 0.0
        %v1639 = vsel %vm1623, %v1538, 0.0
        %v1640 = vsel %vm1622, %v1537, 0.0
        %v1641 = vsel %vm1623, %v1536, 0.0
        %v1642 = vsel %vm1622, %v1535, 0.0
        %v1643 = vsel %vm1623, %v1534, 0.0
        %v1644 = vsel %vm1622, %v1533, 0.0
        %v1645 = vsel %vm1623, %v1532, 0.0
        %v1646 = vsel %vm1622, %v1531, 0.0
        %v1647 = vsel %vm1623, %v1530, 0.0
        %v1648 = vsel %vm1622, %v1529, 0.0
        %v1649 = vsel %vm1623, %v1528, 0.0
        %v1650 = vsel %vm1622, %v1527, 0.0
        %v1651 = vsel %vm1623, %v1526, 0.0
        %v1652 = vsel %vm1622, %v1525, 0.0
        %v1653 = vsel %vm1623, %v1524, 0.0
        %v1654 = vsel %vm1622, %v1523, 0.0
        %v1655 = vsel %vm1623, %v1554, 0.0
        %v1656 = vadd.f32 %v1590, %v1624
        %v1657 = vadd.f32 %v1591, %v1625
        %v1658 = vadd.f32 %v1592, %v1626
        %v1659 = vadd.f32 %v1593, %v1627
        %v1660 = vadd.f32 %v1594, %v1628
        %v1661 = vadd.f32 %v1595, %v1629
        %v1662 = vadd.f32 %v1596, %v1630
        %v1663 = vadd.f32 %v1597, %v1631
        %v1664 = vadd.f32 %v1598, %v1632
        %v1665 = vadd.f32 %v1599, %v1633
        %v1666 = vadd.f32 %v1600, %v1634
        %v1667 = vadd.f32 %v1601, %v1635
        %v1668 = vadd.f32 %v1602, %v1636
        %v1669 = vadd.f32 %v1603, %v1637
        %v1670 = vadd.f32 %v1604, %v1638
        %v1671 = vadd.f32 %v1605, %v1639
        %v1672 = vadd.f32 %v1606, %v1640
        %v1673 = vadd.f32 %v1607, %v1641
        %v1674 = vadd.f32 %v1608, %v1642
        %v1675 = vadd.f32 %v1609, %v1643
        %v1676 = vadd.f32 %v1610, %v1644
        %v1677 = vadd.f32 %v1611, %v1645
        %v1678 = vadd.f32 %v1612, %v1646
        %v1679 = vadd.f32 %v1613, %v1647
        %v1680 = vadd.f32 %v1614, %v1648
        %v1681 = vadd.f32 %v1615, %v1649
        %v1682 = vadd.f32 %v1616, %v1650
        %v1683 = vadd.f32 %v1617, %v1651
        %v1684 = vadd.f32 %v1618, %v1652
        %v1685 = vadd.f32 %v1619, %v1653
        %v1686 = vadd.f32 %v1620, %v1654
        %v1687 = vadd.f32 %v1621, %v1655
        %v1688 = vld [vmem:[%s6] sm:$0x1]
        %v1690 = vperm.slane %v1688, 0
        %v1692 = vadd.f32 %v1656, %v1690
        %v1693 = vadd.f32 %v1657, %v1690
        %v1694 = vadd.f32 %v1658, %v1690
        %v1695 = vadd.f32 %v1659, %v1690
        %v1696 = vadd.f32 %v1660, %v1690
        %v1697 = vadd.f32 %v1661, %v1690
        %v1698 = vadd.f32 %v1662, %v1690
        %v1699 = vadd.f32 %v1663, %v1690
        %v1700 = vadd.f32 %v1664, %v1690
        %v1701 = vadd.f32 %v1665, %v1690
        %v1702 = vadd.f32 %v1666, %v1690
        %v1703 = vadd.f32 %v1667, %v1690
        %v1704 = vadd.f32 %v1668, %v1690
        %v1705 = vadd.f32 %v1669, %v1690
        %v1706 = vadd.f32 %v1670, %v1690
        %v1707 = vadd.f32 %v1671, %v1690
        %v1708 = vadd.f32 %v1672, %v1690
        %v1709 = vadd.f32 %v1673, %v1690
        %v1710 = vadd.f32 %v1674, %v1690
        %v1711 = vadd.f32 %v1675, %v1690
        %v1712 = vadd.f32 %v1676, %v1690
        %v1713 = vadd.f32 %v1677, %v1690
        %v1714 = vadd.f32 %v1678, %v1690
        %v1715 = vadd.f32 %v1679, %v1690
        %v1716 = vadd.f32 %v1680, %v1690
        %v1717 = vadd.f32 %v1681, %v1690
        %v1718 = vadd.f32 %v1682, %v1690
        %v1719 = vadd.f32 %v1683, %v1690
        %v1720 = vadd.f32 %v1684, %v1690
        %v1721 = vadd.f32 %v1685, %v1690
        %v1722 = vadd.f32 %v1686, %v1690
        %v1723 = vadd.f32 %v1687, %v1690
        %v1724 = vmul.f32 %v1692, 0.5
        %v1725 = vmul.f32 %v1693, 0.5
        %v1726 = vmul.f32 %v1694, 0.5
        %v1727 = vmul.f32 %v1695, 0.5
        %v1728 = vmul.f32 %v1696, 0.5
        %v1729 = vmul.f32 %v1697, 0.5
        %v1730 = vmul.f32 %v1698, 0.5
        %v1731 = vmul.f32 %v1699, 0.5
        %v1732 = vmul.f32 %v1700, 0.5
        %v1733 = vmul.f32 %v1701, 0.5
        %v1734 = vmul.f32 %v1702, 0.5
        %v1735 = vmul.f32 %v1703, 0.5
        %v1736 = vmul.f32 %v1704, 0.5
        %v1737 = vmul.f32 %v1705, 0.5
        %v1738 = vmul.f32 %v1706, 0.5
        %v1739 = vmul.f32 %v1707, 0.5
        %v1740 = vmul.f32 %v1708, 0.5
        %v1741 = vmul.f32 %v1709, 0.5
        %v1742 = vmul.f32 %v1710, 0.5
        %v1743 = vmul.f32 %v1711, 0.5
        %v1744 = vmul.f32 %v1712, 0.5
        %v1745 = vmul.f32 %v1713, 0.5
        %v1746 = vmul.f32 %v1714, 0.5
        %v1747 = vmul.f32 %v1715, 0.5
        %v1748 = vmul.f32 %v1716, 0.5
        %v1749 = vmul.f32 %v1717, 0.5
        %v1750 = vmul.f32 %v1718, 0.5
        %v1751 = vmul.f32 %v1719, 0.5
        %v1752 = vmul.f32 %v1720, 0.5
        %v1753 = vmul.f32 %v1721, 0.5
        %v1754 = vmul.f32 %v1722, 0.5
        %v1755 = vmul.f32 %v1723, 0.5
        %v1756 = vmul.f32 %v1692, %v1692
        %v1757 = vmul.f32 %v1693, %v1693
        %v1758 = vmul.f32 %v1694, %v1694
        %v1759 = vmul.f32 %v1695, %v1695
        %v1760 = vmul.f32 %v1696, %v1696
        %v1761 = vmul.f32 %v1697, %v1697
        %v1762 = vmul.f32 %v1698, %v1698
        %v1763 = vmul.f32 %v1699, %v1699
        %v1764 = vmul.f32 %v1700, %v1700
        %v1765 = vmul.f32 %v1701, %v1701
        %v1766 = vmul.f32 %v1702, %v1702
        %v1767 = vmul.f32 %v1703, %v1703
        %v1768 = vmul.f32 %v1704, %v1704
        %v1769 = vmul.f32 %v1705, %v1705
        %v1770 = vmul.f32 %v1706, %v1706
        %v1771 = vmul.f32 %v1707, %v1707
        %v1772 = vmul.f32 %v1708, %v1708
        %v1773 = vmul.f32 %v1709, %v1709
        %v1774 = vmul.f32 %v1710, %v1710
        %v1775 = vmul.f32 %v1711, %v1711
        %v1776 = vmul.f32 %v1712, %v1712
        %v1777 = vmul.f32 %v1713, %v1713
        %v1778 = vmul.f32 %v1714, %v1714
        %v1779 = vmul.f32 %v1715, %v1715
        %v1780 = vmul.f32 %v1716, %v1716
        %v1781 = vmul.f32 %v1717, %v1717
        %v1782 = vmul.f32 %v1718, %v1718
        %v1783 = vmul.f32 %v1719, %v1719
        %v1784 = vmul.f32 %v1720, %v1720
        %v1785 = vmul.f32 %v1721, %v1721
        %v1786 = vmul.f32 %v1722, %v1722
        %v1787 = vmul.f32 %v1723, %v1723
        %v1788 = vmul.f32 %v1756, %v1692
        %v1789 = vmul.f32 %v1757, %v1693
        %v1790 = vmul.f32 %v1758, %v1694
        %v1791 = vmul.f32 %v1759, %v1695
        %v1792 = vmul.f32 %v1760, %v1696
        %v1793 = vmul.f32 %v1761, %v1697
        %v1794 = vmul.f32 %v1762, %v1698
        %v1795 = vmul.f32 %v1763, %v1699
        %v1796 = vmul.f32 %v1764, %v1700
        %v1797 = vmul.f32 %v1765, %v1701
        %v1798 = vmul.f32 %v1766, %v1702
        %v1799 = vmul.f32 %v1767, %v1703
        %v1800 = vmul.f32 %v1768, %v1704
        %v1801 = vmul.f32 %v1769, %v1705
        %v1802 = vmul.f32 %v1770, %v1706
        %v1803 = vmul.f32 %v1771, %v1707
        %v1804 = vmul.f32 %v1772, %v1708
        %v1805 = vmul.f32 %v1773, %v1709
        %v1806 = vmul.f32 %v1774, %v1710
        %v1807 = vmul.f32 %v1775, %v1711
        %v1808 = vmul.f32 %v1776, %v1712
        %v1809 = vmul.f32 %v1777, %v1713
        %v1810 = vmul.f32 %v1778, %v1714
        %v1811 = vmul.f32 %v1779, %v1715
        %v1812 = vmul.f32 %v1780, %v1716
        %v1813 = vmul.f32 %v1781, %v1717
        %v1814 = vmul.f32 %v1782, %v1718
        %v1815 = vmul.f32 %v1783, %v1719
        %v1816 = vmul.f32 %v1784, %v1720
        %v1817 = vmul.f32 %v1785, %v1721
        %v1818 = vmul.f32 %v1786, %v1722
        %v1819 = vmul.f32 %v1787, %v1723
        %v1820 = vmul.f32 %v1788, 0.044715
        %v1821 = vmul.f32 %v1789, 0.044715
        %v1822 = vmul.f32 %v1790, 0.044715
        %v1823 = vmul.f32 %v1791, 0.044715
        %v1824 = vmul.f32 %v1792, 0.044715
        %v1825 = vmul.f32 %v1793, 0.044715
        %v1826 = vmul.f32 %v1794, 0.044715
        %v1827 = vmul.f32 %v1795, 0.044715
        %v1828 = vmul.f32 %v1796, 0.044715
        %v1829 = vmul.f32 %v1797, 0.044715
        %v1830 = vmul.f32 %v1798, 0.044715
        %v1831 = vmul.f32 %v1799, 0.044715
        %v1832 = vmul.f32 %v1800, 0.044715
        %v1833 = vmul.f32 %v1801, 0.044715
        %v1834 = vmul.f32 %v1802, 0.044715
        %v1835 = vmul.f32 %v1803, 0.044715
        %v1836 = vmul.f32 %v1804, 0.044715
        %v1837 = vmul.f32 %v1805, 0.044715
        %v1838 = vmul.f32 %v1806, 0.044715
        %v1839 = vmul.f32 %v1807, 0.044715
        %v1840 = vmul.f32 %v1808, 0.044715
        %v1841 = vmul.f32 %v1809, 0.044715
        %v1842 = vmul.f32 %v1810, 0.044715
        %v1843 = vmul.f32 %v1811, 0.044715
        %v1844 = vmul.f32 %v1812, 0.044715
        %v1845 = vmul.f32 %v1813, 0.044715
        %v1846 = vmul.f32 %v1814, 0.044715
        %v1847 = vmul.f32 %v1815, 0.044715
        %v1848 = vmul.f32 %v1816, 0.044715
        %v1849 = vmul.f32 %v1817, 0.044715
        %v1850 = vmul.f32 %v1818, 0.044715
        %v1851 = vmul.f32 %v1819, 0.044715
        %v1852 = vadd.f32 %v1692, %v1820
        %v1853 = vadd.f32 %v1693, %v1821
        %v1854 = vadd.f32 %v1694, %v1822
        %v1855 = vadd.f32 %v1695, %v1823
        %v1856 = vadd.f32 %v1696, %v1824
        %v1857 = vadd.f32 %v1697, %v1825
        %v1858 = vadd.f32 %v1698, %v1826
        %v1859 = vadd.f32 %v1699, %v1827
        %v1860 = vadd.f32 %v1700, %v1828
        %v1861 = vadd.f32 %v1701, %v1829
        %v1862 = vadd.f32 %v1702, %v1830
        %v1863 = vadd.f32 %v1703, %v1831
        %v1864 = vadd.f32 %v1704, %v1832
        %v1865 = vadd.f32 %v1705, %v1833
        %v1866 = vadd.f32 %v1706, %v1834
        %v1867 = vadd.f32 %v1707, %v1835
        %v1868 = vadd.f32 %v1708, %v1836
        %v1869 = vadd.f32 %v1709, %v1837
        %v1870 = vadd.f32 %v1710, %v1838
        %v1871 = vadd.f32 %v1711, %v1839
        %v1872 = vadd.f32 %v1712, %v1840
        %v1873 = vadd.f32 %v1713, %v1841
        %v1874 = vadd.f32 %v1714, %v1842
        %v1875 = vadd.f32 %v1715, %v1843
        %v1876 = vadd.f32 %v1716, %v1844
        %v1877 = vadd.f32 %v1717, %v1845
        %v1878 = vadd.f32 %v1718, %v1846
        %v1879 = vadd.f32 %v1719, %v1847
        %v1880 = vadd.f32 %v1720, %v1848
        %v1881 = vadd.f32 %v1721, %v1849
        %v1882 = vadd.f32 %v1722, %v1850
        %v1883 = vadd.f32 %v1723, %v1851
        %v1884 = vmul.f32 %v1852, 0.7978846
        %v1885 = vmul.f32 %v1853, 0.7978846
        %v1886 = vmul.f32 %v1854, 0.7978846
        %v1887 = vmul.f32 %v1855, 0.7978846
        %v1888 = vmul.f32 %v1856, 0.7978846
        %v1889 = vmul.f32 %v1857, 0.7978846
        %v1890 = vmul.f32 %v1858, 0.7978846
        %v1891 = vmul.f32 %v1859, 0.7978846
        %v1892 = vmul.f32 %v1860, 0.7978846
        %v1893 = vmul.f32 %v1861, 0.7978846
        %v1894 = vmul.f32 %v1862, 0.7978846
        %v1895 = vmul.f32 %v1863, 0.7978846
        %v1896 = vmul.f32 %v1864, 0.7978846
        %v1897 = vmul.f32 %v1865, 0.7978846
        %v1898 = vmul.f32 %v1866, 0.7978846
        %v1899 = vmul.f32 %v1867, 0.7978846
        %v1900 = vmul.f32 %v1868, 0.7978846
        %v1901 = vmul.f32 %v1869, 0.7978846
        %v1902 = vmul.f32 %v1870, 0.7978846
        %v1903 = vmul.f32 %v1871, 0.7978846
        %v1904 = vmul.f32 %v1872, 0.7978846
        %v1905 = vmul.f32 %v1873, 0.7978846
        %v1906 = vmul.f32 %v1874, 0.7978846
        %v1907 = vmul.f32 %v1875, 0.7978846
        %v1908 = vmul.f32 %v1876, 0.7978846
        %v1909 = vmul.f32 %v1877, 0.7978846
        %v1910 = vmul.f32 %v1878, 0.7978846
        %v1911 = vmul.f32 %v1879, 0.7978846
        %v1912 = vmul.f32 %v1880, 0.7978846
        %v1913 = vmul.f32 %v1881, 0.7978846
        %v1914 = vmul.f32 %v1882, 0.7978846
        %v1915 = vmul.f32 %v1883, 0.7978846
        %v1916 = vtanh.pop %v1884
        %v1917 = vtanh.pop %v1885
        %v1918 = vtanh.pop %v1886
        %v1919 = vtanh.pop %v1887
        %v1920 = vtanh.pop %v1888
        %v1921 = vtanh.pop %v1889
        %v1922 = vtanh.pop %v1890
        %v1923 = vtanh.pop %v1891
        %v1924 = vtanh.pop %v1892
        %v1925 = vtanh.pop %v1893
        %v1926 = vtanh.pop %v1894
        %v1927 = vtanh.pop %v1895
        %v1928 = vtanh.pop %v1896
        %v1929 = vtanh.pop %v1897
        %v1930 = vtanh.pop %v1898
        %v1931 = vtanh.pop %v1899
        %v1932 = vtanh.pop %v1900
        %v1933 = vtanh.pop %v1901
        %v1934 = vtanh.pop %v1902
        %v1935 = vtanh.pop %v1903
        %v1936 = vtanh.pop %v1904
        %v1937 = vtanh.pop %v1905
        %v1938 = vtanh.pop %v1906
        %v1939 = vtanh.pop %v1907
        %v1940 = vtanh.pop %v1908
        %v1941 = vtanh.pop %v1909
        %v1942 = vtanh.pop %v1910
        %v1943 = vtanh.pop %v1911
        %v1944 = vtanh.pop %v1912
        %v1945 = vtanh.pop %v1913
        %v1946 = vtanh.pop %v1914
        %v1947 = vtanh.pop %v1915
        %v1948 = vadd.f32 %v1916, 1.0
        %v1949 = vadd.f32 %v1917, 1.0
        %v1950 = vadd.f32 %v1918, 1.0
        %v1951 = vadd.f32 %v1919, 1.0
        %v1952 = vadd.f32 %v1920, 1.0
        %v1953 = vadd.f32 %v1921, 1.0
        %v1954 = vadd.f32 %v1922, 1.0
        %v1955 = vadd.f32 %v1923, 1.0
        %v1956 = vadd.f32 %v1924, 1.0
        %v1957 = vadd.f32 %v1925, 1.0
        %v1958 = vadd.f32 %v1926, 1.0
        %v1959 = vadd.f32 %v1927, 1.0
        %v1960 = vadd.f32 %v1928, 1.0
        %v1961 = vadd.f32 %v1929, 1.0
        %v1962 = vadd.f32 %v1930, 1.0
        %v1963 = vadd.f32 %v1931, 1.0
        %v1964 = vadd.f32 %v1932, 1.0
        %v1965 = vadd.f32 %v1933, 1.0
        %v1966 = vadd.f32 %v1934, 1.0
        %v1967 = vadd.f32 %v1935, 1.0
        %v1968 = vadd.f32 %v1936, 1.0
        %v1969 = vadd.f32 %v1937, 1.0
        %v1970 = vadd.f32 %v1938, 1.0
        %v1971 = vadd.f32 %v1939, 1.0
        %v1972 = vadd.f32 %v1940, 1.0
        %v1973 = vadd.f32 %v1941, 1.0
        %v1974 = vadd.f32 %v1942, 1.0
        %v1975 = vadd.f32 %v1943, 1.0
        %v1976 = vadd.f32 %v1944, 1.0
        %v1977 = vadd.f32 %v1945, 1.0
        %v1978 = vadd.f32 %v1946, 1.0
        %v1979 = vadd.f32 %v1947, 1.0
        %v1980 = vmul.f32 %v1724, %v1948
        %v1981 = vmul.f32 %v1725, %v1949
        %v1982 = vmul.f32 %v1726, %v1950
        %v1983 = vmul.f32 %v1727, %v1951
        %v1984 = vmul.f32 %v1728, %v1952
        %v1985 = vmul.f32 %v1729, %v1953
        %v1986 = vmul.f32 %v1730, %v1954
        %v1987 = vmul.f32 %v1731, %v1955
        %v1988 = vmul.f32 %v1732, %v1956
        %v1989 = vmul.f32 %v1733, %v1957
        %v1990 = vmul.f32 %v1734, %v1958
        %v1991 = vmul.f32 %v1735, %v1959
        %v1992 = vmul.f32 %v1736, %v1960
        %v1993 = vmul.f32 %v1737, %v1961
        %v1994 = vmul.f32 %v1738, %v1962
        %v1995 = vmul.f32 %v1739, %v1963
        %v1996 = vmul.f32 %v1740, %v1964
        %v1997 = vmul.f32 %v1741, %v1965
        %v1998 = vmul.f32 %v1742, %v1966
        %v1999 = vmul.f32 %v1743, %v1967
        %v2000 = vmul.f32 %v1744, %v1968
        %v2001 = vmul.f32 %v1745, %v1969
        %v2002 = vmul.f32 %v1746, %v1970
        %v2003 = vmul.f32 %v1747, %v1971
        %v2004 = vmul.f32 %v1748, %v1972
        %v2005 = vmul.f32 %v1749, %v1973
        %v2006 = vmul.f32 %v1750, %v1974
        %v2007 = vmul.f32 %v1751, %v1975
        %v2008 = vmul.f32 %v1752, %v1976
        %v2009 = vmul.f32 %v1753, %v1977
        %v2010 = vmul.f32 %v1754, %v1978
        %v2011 = vmul.f32 %v1755, %v1979
        %v2012 = vld [vmem:[%s7] sm:$0xff]
        %v2013 = vld [vmem:[%s7 + $0x8] sm:$0xff]
        %v2014 = vld [vmem:[%s7 + $0x10] sm:$0xff]
        %v2015 = vld [vmem:[%s7 + $0x18] sm:$0xff]
        %v2016 = vld [vmem:[%s7 + $0x20] sm:$0xff]
        %v2017 = vld [vmem:[%s7 + $0x28] sm:$0xff]
        %v2018 = vld [vmem:[%s7 + $0x30] sm:$0xff]
        %v2019 = vld [vmem:[%s7 + $0x38] sm:$0xff]
        %v2020 = vld [vmem:[%s8] sm:$0x1]
        %v2022 = vperm.slane %v2020, 0
        %v2025 = vsel %vm746, %v1980, 0
        %v2028 = vsel %vm746, %v1981, 0
        %v2031 = vsel %vm746, %v1982, 0
        %v2034 = vsel %vm746, %v1983, 0
        %v2037 = vsel %vm746, %v1984, 0
        %v2040 = vsel %vm746, %v1985, 0
        %v2043 = vsel %vm746, %v1986, 0
        %v2046 = vsel %vm746, %v1987, 0
        %v2049 = vsel %vm746, %v1988, 0
        %v2052 = vsel %vm746, %v1989, 0
        %v2055 = vsel %vm746, %v1990, 0
        %v2058 = vsel %vm746, %v1991, 0
        %v2061 = vsel %vm746, %v1992, 0
        %v2064 = vsel %vm746, %v1993, 0
        %v2067 = vsel %vm746, %v1994, 0
        %v2070 = vsel %vm746, %v1995, 0
        %v2073 = vsel %vm746, %v1996, 0
        %v2076 = vsel %vm746, %v1997, 0
        %v2079 = vsel %vm746, %v1998, 0
        %v2082 = vsel %vm746, %v1999, 0
        %v2085 = vsel %vm746, %v2000, 0
        %v2088 = vsel %vm746, %v2001, 0
        %v2091 = vsel %vm746, %v2002, 0
        %v2094 = vsel %vm746, %v2003, 0
        %v2097 = vsel %vm746, %v2004, 0
        %v2100 = vsel %vm746, %v2005, 0
        %v2103 = vsel %vm746, %v2006, 0
        %v2106 = vsel %vm746, %v2007, 0
        %v2109 = vsel %vm746, %v2008, 0
        %v2112 = vsel %vm746, %v2009, 0
        %v2115 = vsel %vm746, %v2010, 0
        %v2118 = vsel %vm746, %v2011, 0
        %2120 = vmatpush.msra.mxu0 0.0
        %2121 = vmatpush.msra.mxu0 0.0
        %2122 = vmatpush.msra.mxu0 0.0
        %2123 = vmatpush.msra.mxu0 0.0
        %2124 = vmatpush.msra.mxu0 0.0
        %2125 = vmatpush.msra.mxu0 0.0
        %2126 = vmatpush.msra.mxu0 0.0
        %2127 = vmatpush.msra.mxu0 0.0
        %2128 = vmatpush.msra.mxu0 %v2019
        %2129 = vmatpush.msra.mxu0 %v2018
        %2130 = vmatpush.msra.mxu0 %v2017
        %2131 = vmatpush.msra.mxu0 %v2016
        %2132 = vmatpush.msra.mxu0 %v2015
        %2133 = vmatpush.msra.mxu0 %v2014
        %2134 = vmatpush.msra.mxu0 %v2013
        %2135 = vmatpush.msra.mxu0 %v2012
        %2136 = vmatmul.f32.gmra.mxu0 %v2025
        %v2137 = vpop.f32.mrf.mxu0
        %v2138 = vadd.f32 %v2022, %v2137
        %2139 = vmatmul.f32.gmra.mxu0 %v2028
        %v2140 = vpop.f32.mrf.mxu0
        %v2141 = vadd.f32 %v2022, %v2140
        %2142 = vmatmul.f32.gmra.mxu0 %v2031
        %v2143 = vpop.f32.mrf.mxu0
        %v2144 = vadd.f32 %v2022, %v2143
        %2145 = vmatmul.f32.gmra.mxu0 %v2034
        %v2146 = vpop.f32.mrf.mxu0
        %v2147 = vadd.f32 %v2022, %v2146
        %2148 = vmatmul.f32.gmra.mxu0 %v2037
        %v2149 = vpop.f32.mrf.mxu0
        %v2150 = vadd.f32 %v2022, %v2149
        %2151 = vmatmul.f32.gmra.mxu0 %v2040
        %v2152 = vpop.f32.mrf.mxu0
        %v2153 = vadd.f32 %v2022, %v2152
        %2154 = vmatmul.f32.gmra.mxu0 %v2043
        %v2155 = vpop.f32.mrf.mxu0
        %v2156 = vadd.f32 %v2022, %v2155
        %2157 = vmatmul.f32.gmra.mxu0 %v2046
        %v2158 = vpop.f32.mrf.mxu0
        %v2159 = vadd.f32 %v2022, %v2158
        %2160 = vmatmul.f32.gmra.mxu0 %v2049
        %v2161 = vpop.f32.mrf.mxu0
        %v2162 = vadd.f32 %v2022, %v2161
        %2163 = vmatmul.f32.gmra.mxu0 %v2052
        %v2164 = vpop.f32.mrf.mxu0
        %v2165 = vadd.f32 %v2022, %v2164
        %2166 = vmatmul.f32.gmra.mxu0 %v2055
        %v2167 = vpop.f32.mrf.mxu0
        %v2168 = vadd.f32 %v2022, %v2167
        %2169 = vmatmul.f32.gmra.mxu0 %v2058
        %v2170 = vpop.f32.mrf.mxu0
        %v2171 = vadd.f32 %v2022, %v2170
        %2172 = vmatmul.f32.gmra.mxu0 %v2061
        %v2173 = vpop.f32.mrf.mxu0
        %v2174 = vadd.f32 %v2022, %v2173
        %2175 = vmatmul.f32.gmra.mxu0 %v2064
        %v2176 = vpop.f32.mrf.mxu0
        %v2177 = vadd.f32 %v2022, %v2176
        %2178 = vmatmul.f32.gmra.mxu0 %v2067
        %v2179 = vpop.f32.mrf.mxu0
        %v2180 = vadd.f32 %v2022, %v2179
        %2181 = vmatmul.f32.gmra.mxu0 %v2070
        %v2182 = vpop.f32.mrf.mxu0
        %v2183 = vadd.f32 %v2022, %v2182
        %2184 = vmatmul.f32.gmra.mxu0 %v2073
        %v2185 = vpop.f32.mrf.mxu0
        %v2186 = vadd.f32 %v2022, %v2185
        %2187 = vmatmul.f32.gmra.mxu0 %v2076
        %v2188 = vpop.f32.mrf.mxu0
        %v2189 = vadd.f32 %v2022, %v2188
        %2190 = vmatmul.f32.gmra.mxu0 %v2079
        %v2191 = vpop.f32.mrf.mxu0
        %v2192 = vadd.f32 %v2022, %v2191
        %2193 = vmatmul.f32.gmra.mxu0 %v2082
        %v2194 = vpop.f32.mrf.mxu0
        %v2195 = vadd.f32 %v2022, %v2194
        %2196 = vmatmul.f32.gmra.mxu0 %v2085
        %v2197 = vpop.f32.mrf.mxu0
        %v2198 = vadd.f32 %v2022, %v2197
        %2199 = vmatmul.f32.gmra.mxu0 %v2088
        %v2200 = vpop.f32.mrf.mxu0
        %v2201 = vadd.f32 %v2022, %v2200
        %2202 = vmatmul.f32.gmra.mxu0 %v2091
        %v2203 = vpop.f32.mrf.mxu0
        %v2204 = vadd.f32 %v2022, %v2203
        %2205 = vmatmul.f32.gmra.mxu0 %v2094
        %v2206 = vpop.f32.mrf.mxu0
        %v2207 = vadd.f32 %v2022, %v2206
        %2208 = vmatmul.f32.gmra.mxu0 %v2097
        %v2209 = vpop.f32.mrf.mxu0
        %v2210 = vadd.f32 %v2022, %v2209
        %2211 = vmatmul.f32.gmra.mxu0 %v2100
        %v2212 = vpop.f32.mrf.mxu0
        %v2213 = vadd.f32 %v2022, %v2212
        %2214 = vmatmul.f32.gmra.mxu0 %v2103
        %v2215 = vpop.f32.mrf.mxu0
        %v2216 = vadd.f32 %v2022, %v2215
        %2217 = vmatmul.f32.gmra.mxu0 %v2106
        %v2218 = vpop.f32.mrf.mxu0
        %v2219 = vadd.f32 %v2022, %v2218
        %2220 = vmatmul.f32.gmra.mxu0 %v2109
        %v2221 = vpop.f32.mrf.mxu0
        %v2222 = vadd.f32 %v2022, %v2221
        %2223 = vmatmul.f32.gmra.mxu0 %v2112
        %v2224 = vpop.f32.mrf.mxu0
        %v2225 = vadd.f32 %v2022, %v2224
        %2226 = vmatmul.f32.gmra.mxu0 %v2115
        %v2227 = vpop.f32.mrf.mxu0
        %v2228 = vadd.f32 %v2022, %v2227
        %2229 = vmatmul.f32.gmra.mxu0 %v2118
        %v2230 = vpop.f32.mrf.mxu0
        %v2231 = vadd.f32 %v2022, %v2230
        %2232 = vdwg.mxu0
        %2233 = vst.msk [vmem:[%s484] sm:$0xff] %vm535, %v2138
        %2234 = vst.msk [vmem:[%s484 + $0x8] sm:$0xff] %vm535, %v2141
        %2235 = vst.msk [vmem:[%s484 + $0x10] sm:$0xff] %vm535, %v2144
        %2236 = vst.msk [vmem:[%s484 + $0x18] sm:$0xff] %vm535, %v2147
        %2237 = vst.msk [vmem:[%s484 + $0x20] sm:$0xff] %vm535, %v2150
        %2238 = vst.msk [vmem:[%s484 + $0x28] sm:$0xff] %vm535, %v2153
        %2239 = vst.msk [vmem:[%s484 + $0x30] sm:$0xff] %vm535, %v2156
        %2240 = vst.msk [vmem:[%s484 + $0x38] sm:$0xff] %vm535, %v2159
        %2241 = vst.msk [vmem:[%s484 + $0x40] sm:$0xff] %vm535, %v2162
        %2242 = vst.msk [vmem:[%s484 + $0x48] sm:$0xff] %vm535, %v2165
        %2243 = vst.msk [vmem:[%s484 + $0x50] sm:$0xff] %vm535, %v2168
        %2244 = vst.msk [vmem:[%s484 + $0x58] sm:$0xff] %vm535, %v2171
        %2245 = vst.msk [vmem:[%s484 + $0x60] sm:$0xff] %vm535, %v2174
        %2246 = vst.msk [vmem:[%s484 + $0x68] sm:$0xff] %vm535, %v2177
        %2247 = vst.msk [vmem:[%s484 + $0x70] sm:$0xff] %vm535, %v2180
        %2248 = vst.msk [vmem:[%s484 + $0x78] sm:$0xff] %vm535, %v2183
        %2249 = vst.msk [vmem:[%s484 + $0x80] sm:$0xff] %vm535, %v2186
        %2250 = vst.msk [vmem:[%s484 + $0x88] sm:$0xff] %vm535, %v2189
        %2251 = vst.msk [vmem:[%s484 + $0x90] sm:$0xff] %vm535, %v2192
        %2252 = vst.msk [vmem:[%s484 + $0x98] sm:$0xff] %vm535, %v2195
        %2253 = vst.msk [vmem:[%s484 + $0xa0] sm:$0xff] %vm535, %v2198
        %2254 = vst.msk [vmem:[%s484 + $0xa8] sm:$0xff] %vm535, %v2201
        %2255 = vst.msk [vmem:[%s484 + $0xb0] sm:$0xff] %vm535, %v2204
        %2256 = vst.msk [vmem:[%s484 + $0xb8] sm:$0xff] %vm535, %v2207
        %2257 = vst.msk [vmem:[%s484 + $0xc0] sm:$0xff] %vm535, %v2210
        %2258 = vst.msk [vmem:[%s484 + $0xc8] sm:$0xff] %vm535, %v2213
        %2259 = vst.msk [vmem:[%s484 + $0xd0] sm:$0xff] %vm535, %v2216
        %2260 = vst.msk [vmem:[%s484 + $0xd8] sm:$0xff] %vm535, %v2219
        %2261 = vst.msk [vmem:[%s484 + $0xe0] sm:$0xff] %vm535, %v2222
        %2262 = vst.msk [vmem:[%s484 + $0xe8] sm:$0xff] %vm535, %v2225
        %2263 = vst.msk [vmem:[%s484 + $0xf0] sm:$0xff] %vm535, %v2228
        %2264 = vst.msk [vmem:[%s484 + $0xf8] sm:$0xff] %vm535, %v2231
        %s2265 = sand.u32 %s277, 1
        %s2266 = scalar_lea.sflag [#allocation5], %s2265
        %s2267 = sand.u32 %s277, 1
        %s2268 = smul.addr %s2267, 256
        %s2269 = scalar_lea.vmem [#allocation9], %s2268
        // Predicated region
        $region85: #{ffn_block2_forward.1} parent=55 // pred_check
          %p2270 = pneg %p287
        $region86: #{ffn_block2_forward.1} parent=55 // pred_check_branch
          %2272 = sbr.rel (%p2270) target = $region88
        $region87: #{ffn_block2_forward.1} parent=55 // pred_region
          %s2273 = smul.u32 16, %s34
          %2275 = vsyncadd %s2266, 0
          %s2276 = smul.addr %s2273, 2
          %s2277 = smul.addr %s33, 32
          %s2278 = sadd.s32 %s2276, %s2277
          %s2279 = smul.addr %s2278, 8
          %s2280 = scalar_lea.hbm %s9, %s2279
          %s2281 = sshll.u32 %s2269, 4
          %s2282 = int_to_ptr.vmem [resolvable:$true] %s2281
          %s2283 = sshll.u32 %s2280, 4
          %s2284 = int_to_ptr.hbm [resolvable:$true] %s2283
          %2289 = dma.vmem_to_hbm [thread:$0]  %s2282, 4096, %s2284, %s2266, 128, 128, 8
        $region88: #{ffn_block2_forward.1} parent=55 // pred_fallthru
          _
      $region56: #{ffn_block2_forward.1} parent=5 // pred_fallthru
        _
      %p2290 = scmp.le.s32.totalorder 2, %s24
      // Predicated region
      $region89: #{ffn_block2_forward.1} parent=5 // pred_check
        %p2291 = pneg %p2290
      $region90: #{ffn_block2_forward.1} parent=5 // pred_check_branch
        %2293 = sbr.rel (%p2291) target = $region92
      $region91: #{ffn_block2_forward.1} parent=5 // pred_region
        %s2294 = ssub.s32 %s24, 2
        // Predicated region
        $region93: #{ffn_block2_forward.1} parent=91 // pred_check
          %p2295 = pneg %p293
        $region94: #{ffn_block2_forward.1} parent=91 // pred_check_branch
          %2297 = sbr.rel (%p2295) target = $region96
        $region95: #{ffn_block2_forward.1} parent=91 // pred_region
          %s2298 = sand.u32 %s278, 1
          %s2299 = scalar_lea.sflag [#allocation5], %s2298
          %s2300 = sand.u32 %s278, 1
          %s2301 = smul.addr %s2300, 256
          %s2302 = scalar_lea.vmem [#allocation9], %s2301
          %2304 = dma.done %s2299, 4096
        $region96: #{ffn_block2_forward.1} parent=91 // pred_fallthru
          _
      $region92: #{ffn_block2_forward.1} parent=5 // pred_fallthru
        _
    $region6: #{ffn_block2_forward.1} parent=1 // loop_footer
      %s28 = sadd.s32 1, %s24
    $region7: #{ffn_block2_forward.1} parent=1 // loop_footer_branch
      %23 = sbr.rel target = $region3
    $region8: #{ffn_block2_forward.1} parent=1 // loop_exit
      _
    %2305 = vsyncpa [#allocation4], 1
    %s2306 = scalar_lea.sflag [#allocation4], 1
    %2307 = vsyncpa %s2306, 1
    %2308 = vsyncpa [#allocation7], 1
    %s2309 = scalar_lea.sflag [#allocation7], 1
    %2310 = vsyncpa %s2309, 1
    %2311 = vsyncpa [#allocation5], 1
    %s2312 = scalar_lea.sflag [#allocation5], 1
    %2313 = vsyncpa %s2312, 1

</llo_original>
